<compile_context>
chip_gen: v7x
topology: tpu7x:2x2x1
jax: 0.10.0
libtpu: 0.0.40
codegen_flags: <defaults>
</compile_context>

<pallas_src>
import functools

import jax
import jax.numpy as jnp
import numpy as np
from jax import lax
from jax.experimental import pallas as pl
from jax.experimental.pallas import tpu as pltpu


def _round_up(x, m):
    return ((x + m - 1) // m) * m


# ----------------------------- Pallas kernels -----------------------------

def _encoder_kernel(p_ref, wc_ref, bc_ref, we_ref, be_ref, f_ref, *, Bp, HW):
    """Fused encoder on the whole padded batch: conv(im2col) + ReLU + mean pool + fc + ReLU.

    p_ref : [Bp*HW, Kp]  bf16 im2col patches
    f_ref : [Bp, Ep]     f32 lane-dense features (Ep = 128-padded embed size)
    """
    x = p_ref[...]                                                     # [Bp*HW, Kp]
    conv = jnp.dot(x, wc_ref[...], preferred_element_type=jnp.float32) + bc_ref[...]
    conv = jnp.maximum(conv, 0.0)                                      # [Bp*HW, Ccp] f32
    # Global average pool per batch element (layout-preserving reshape, minor dim kept).
    pooled = jnp.mean(conv.reshape(Bp, HW, conv.shape[-1]), axis=1)    # [Bp, Ccp]
    feat = jnp.dot(pooled.astype(jnp.bfloat16), we_ref[...],
                   preferred_element_type=jnp.float32) + be_ref[...]   # [Bp, Ep]
    f_ref[...] = jnp.maximum(feat, 0.0)


def encoder_forward(patches2d, w_conv_p, b_conv_p, w_enc_p, b_enc_p, *, Bp, HW):
    """patches2d: [Bp*HW, Kp] -> features [Bp, Ep].  Single grid step (no per-element grid)."""
    M, Kp = patches2d.shape
    Ccp = w_conv_p.shape[1]
    Ep = w_enc_p.shape[1]
    return pl.pallas_call(
        functools.partial(_encoder_kernel, Bp=Bp, HW=HW),
        out_shape=jax.ShapeDtypeStruct((Bp, Ep), jnp.float32),
        grid=(1,),
        in_specs=[
            pl.BlockSpec((M, Kp), lambda i: (0, 0)),
            pl.BlockSpec((Kp, Ccp), lambda i: (0, 0)),
            pl.BlockSpec((1, Ccp), lambda i: (0, 0)),
            pl.BlockSpec((Ccp, Ep), lambda i: (0, 0)),
            pl.BlockSpec((1, Ep), lambda i: (0, 0)),
        ],
        out_specs=pl.BlockSpec((Bp, Ep), lambda i: (0, 0)),
        compiler_params=pltpu.CompilerParams(
            dimension_semantics=("arbitrary",)),
    )(patches2d.astype(jnp.bfloat16), w_conv_p.astype(jnp.bfloat16),
      b_conv_p.astype(jnp.float32), w_enc_p.astype(jnp.bfloat16),
      b_enc_p.astype(jnp.float32))


def _decoder_kernel(seq_ref, wih_ref, whh_ref, bl_ref, wfc_ref, bfc_ref,
                    o_ref, hid_sc, *, Bp, T1, H):
    """Fused LSTM (unrolled over T+1 steps) + vocab-tiled output projection.

    seq_ref : [Mp, E]    bf16 time-major rows (row = t*Bp + b), Mp = T1*Bp
    wfc_ref : [H, tn]    bf16 vocab tile of the output projection
    o_ref   : [Mp, tn]   f32 lane-dense logits tile
    hid_sc  : VMEM [Mp, H] bf16 hidden states (persists across vocab grid steps)
    """
    # Recurrence only on the first vocab tile; hid_sc is reused by the later tiles.
    @pl.when(pl.program_id(0) == 0)
    def _recurrence():
        # Hoisted input projection: one [(T+1)*Bp, E] x [E, 4H] matmul.
        gates_x = (jnp.dot(seq_ref[...], wih_ref[...],
                           preferred_element_type=jnp.float32)
                   + bl_ref[...])                                      # [Mp, 4H] f32
        whh = whh_ref[...]                                             # [H, 4H] bf16
        hb = jnp.zeros((Bp, H), jnp.bfloat16)
        c = jnp.zeros((Bp, H), jnp.float32)
        # T1 is a small static constant here -> full unroll.
        # TODO(synk): for long captions switch to lax.fori_loop(unroll=4) with a
        #             gates_x VMEM scratch to bound vreg pressure / compile time.
        for t in range(T1):
            gates = gates_x[t * Bp:(t + 1) * Bp, :] + jnp.dot(
                hb, whh, preferred_element_type=jnp.float32)           # [Bp, 4H] f32
            # Gate order (i, f, o, g): sigmoid over 3H lanes, tanh over H lanes only.
            sig = jax.nn.sigmoid(gates[:, :3 * H])
            g_g = jnp.tanh(gates[:, 3 * H:])
            i_g = sig[:, :H]
            f_g = sig[:, H:2 * H]
            o_g = sig[:, 2 * H:3 * H]
            c = f_g * c + i_g * g_g
            h = o_g * jnp.tanh(c)
            hb = h.astype(jnp.bfloat16)
            hid_sc[pl.ds(t * Bp, Bp), :] = hb                          # sublane-aligned

    # Batched, lane-dense output projection for this vocab tile.
    o_ref[...] = (jnp.dot(hid_sc[...], wfc_ref[...],
                          preferred_element_type=jnp.float32)
                  + bfc_ref[...])


def decoder_forward(seq2d, w_ih, w_hh, b_lstm, w_fc_p, b_fc_p, *, Bp, T1, tn=512):
    """seq2d: [T1*Bp, E] (time-major, bf16-castable) -> logits [T1*Bp, Vp]."""
    Mp, E = seq2d.shape
    H = w_hh.shape[0]
    Vp = w_fc_p.shape[1]
    tn = min(tn, Vp)
    assert Vp % tn == 0
    return pl.pallas_call(
        functools.partial(_decoder_kernel, Bp=Bp, T1=T1, H=H),
        out_shape=jax.ShapeDtypeStruct((Mp, Vp), jnp.float32),
        grid=(Vp // tn,),
        in_specs=[
            pl.BlockSpec((Mp, E), lambda j: (0, 0)),
            pl.BlockSpec((E, 4 * H), lambda j: (0, 0)),
            pl.BlockSpec((H, 4 * H), lambda j: (0, 0)),
            pl.BlockSpec((1, 4 * H), lambda j: (0, 0)),
            pl.BlockSpec((H, tn), lambda j: (0, j)),
            pl.BlockSpec((1, tn), lambda j: (0, j)),
        ],
        out_specs=pl.BlockSpec((Mp, tn), lambda j: (0, j)),
        scratch_shapes=[pltpu.VMEM((Mp, H), jnp.bfloat16)],
        compiler_params=pltpu.CompilerParams(
            dimension_semantics=("arbitrary",)),
    )(seq2d.astype(jnp.bfloat16), w_ih.astype(jnp.bfloat16),
      w_hh.astype(jnp.bfloat16), b_lstm.reshape(1, 4 * H).astype(jnp.float32),
      w_fc_p.astype(jnp.bfloat16), b_fc_p.reshape(1, Vp).astype(jnp.float32))


# ----------------------------- JAX glue -----------------------------------

def _im2col_3x3_same(images_nhwc):
    """3x3 SAME-padded patches: [B,H,W,C] -> [B*H*W, 9*C] (kh, kw, cin order)."""
    B, H, W, C = images_nhwc.shape
    xp = jnp.pad(images_nhwc, ((0, 0), (1, 1), (1, 1), (0, 0)))
    cols = []
    for di in range(3):
        for dj in range(3):
            cols.append(xp[:, di:di + H, dj:dj + W, :])
    patches = jnp.concatenate(cols, axis=-1)          # [B, H, W, 9*C]
    return patches.reshape(B * H * W, 9 * C)


def init_params(key, embed_size, hidden_size, vocab_size,
                in_channels=3, conv_channels=8):
    ks = jax.random.split(key, 10)
    s = 0.1
    p = {
        # encoder conv: weight stored as [KH*KW*Cin, Cout] (im2col layout)
        "w_conv": s * jax.random.normal(ks[0], (9 * in_channels, conv_channels), jnp.float32),
        "b_conv": s * jax.random.normal(ks[1], (conv_channels,), jnp.float32),
        # encoder projection to embed_size
        "w_enc": s * jax.random.normal(ks[2], (conv_channels, embed_size), jnp.float32),
        "b_enc": s * jax.random.normal(ks[3], (embed_size,), jnp.float32),
        # decoder embedding table
        "embed": s * jax.random.normal(ks[4], (vocab_size, embed_size), jnp.float32),
        # LSTM (PyTorch gate order i,f,g,o); b = b_ih + b_hh folded together
        "w_ih": s * jax.random.normal(ks[5], (embed_size, 4 * hidden_size), jnp.float32),
        "w_hh": s * jax.random.normal(ks[6], (hidden_size, 4 * hidden_size), jnp.float32),
        "b_lstm": s * jax.random.normal(ks[7], (4 * hidden_size,), jnp.float32),
        # decoder output projection
        "w_fc": s * jax.random.normal(ks[8], (hidden_size, vocab_size), jnp.float32),
        "b_fc": s * jax.random.normal(ks[9], (vocab_size,), jnp.float32),
    }
    return p


def caption_model_forward(params, images_nchw, captions):
    """images_nchw: [B, 3, H, W] float32 (PyTorch layout); captions: [B, T] int32.

    Returns logits [B, T+1, vocab_size].
    """
    B, Cin, IH, IW = images_nchw.shape
    T = captions.shape[1]
    E = params["w_enc"].shape[1]
    H = params["w_hh"].shape[0]
    V = params["w_fc"].shape[1]
    Cc = params["w_conv"].shape[1]

    Bp = _round_up(B, 8)                               # sublane-aligned batch
    HW = IH * IW
    T1 = T + 1

    # ---- EncoderCNN (single fused kernel over the padded batch) ----
    x_nhwc = jnp.transpose(images_nchw, (0, 2, 3, 1))                  # NCHW -> NHWC
    x_nhwc = jnp.pad(x_nhwc, ((0, Bp - B), (0, 0), (0, 0), (0, 0)))
    patches = _im2col_3x3_same(x_nhwc)                                 # [Bp*HW, 9*Cin]
    # TODO(synk): on v5e, avoid materializing im2col in HBM by doing the 3x3 conv as 9
    #             shifted matmul accumulations from the image tile inside the kernel.
    K = patches.shape[1]
    Kp = _round_up(K, 8)                                               # 27 -> 32
    patches = jnp.pad(patches, ((0, 0), (0, Kp - K)))

    Ccp = _round_up(Cc, 128)                                           # lane-dense conv out
    Ep = _round_up(E, 128)                                             # lane-dense features
    w_conv_p = jnp.pad(params["w_conv"], ((0, Kp - K), (0, Ccp - Cc)))
    b_conv_p = jnp.pad(params["b_conv"], (0, Ccp - Cc)).reshape(1, Ccp)
    w_enc_p = jnp.pad(params["w_enc"], ((0, Ccp - Cc), (0, Ep - E)))
    b_enc_p = jnp.pad(params["b_enc"], (0, Ep - E)).reshape(1, Ep)

    feat_p = encoder_forward(patches, w_conv_p, b_conv_p, w_enc_p, b_enc_p,
                             Bp=Bp, HW=HW)                             # [Bp, Ep]
    features = feat_p[:, :E]                                           # [Bp, E]

    # ---- DecoderRNN (embedding lookup + concat in XLA; fused LSTM+FC kernel) ----
    cap_p = jnp.pad(captions, ((0, Bp - B), (0, 0)))                   # pad batch
    emb = jnp.take(params["embed"], cap_p, axis=0)                     # [Bp, T, E]
    # TODO(synk): fuse the embedding gather + concat into the decoder kernel via scalar
    #             prefetch to drop the extra HBM round trip over [Bp, T+1, E].
    seq = jnp.concatenate([features[:, None, :], emb], axis=1)         # [Bp, T1, E]
    seq2d = jnp.transpose(seq, (1, 0, 2)).reshape(T1 * Bp, E)          # time-major rows

    # Gate reorder (i, f, g, o) -> (i, f, o, g): sigmoid over 3H, tanh over H only.
    perm = jnp.concatenate([jnp.arange(0, 2 * H),
                            jnp.arange(3 * H, 4 * H),
                            jnp.arange(2 * H, 3 * H)])
    w_ih_r = params["w_ih"][:, perm]
    w_hh_r = params["w_hh"][:, perm]
    b_lstm_r = params["b_lstm"][perm]

    Vp = _round_up(V, 128)                                             # lane-dense logits
    w_fc_p = jnp.pad(params["w_fc"], ((0, 0), (0, Vp - V)))
    b_fc_p = jnp.pad(params["b_fc"], (0, Vp - V))

    logits2d = decoder_forward(seq2d, w_ih_r, w_hh_r, b_lstm_r, w_fc_p, b_fc_p,
                               Bp=Bp, T1=T1)                           # [T1*Bp, Vp]
    logits = logits2d.reshape(T1, Bp, Vp).transpose(1, 0, 2)[:B, :, :V]
    return logits


# ----------------------------- pure-JAX reference --------------------------

def reference_forward(params, images_nchw, captions):
    B, Cin, IH, IW = images_nchw.shape
    T = captions.shape[1]
    H = params["w_hh"].shape[0]

    x_nhwc = jnp.transpose(images_nchw, (0, 2, 3, 1))
    patches = _im2col_3x3_same(x_nhwc)
    conv = jnp.maximum(patches @ params["w_conv"] + params["b_conv"], 0.0)
    pooled = conv.reshape(B, IH * IW, -1).mean(axis=1)
    features = jnp.maximum(pooled @ params["w_enc"] + params["b_enc"], 0.0)

    emb = jnp.take(params["embed"], captions, axis=0)
    seq = jnp.concatenate([features[:, None, :], emb], axis=1)
    xs = jnp.transpose(seq, (1, 0, 2))

    def step(carry, x_t):
        h, c = carry
        gates = x_t @ params["w_ih"] + h @ params["w_hh"] + params["b_lstm"]
        i = jax.nn.sigmoid(gates[:, 0:H])
        f = jax.nn.sigmoid(gates[:, H:2 * H])
        g = jnp.tanh(gates[:, 2 * H:3 * H])
        o = jax.nn.sigmoid(gates[:, 3 * H:4 * H])
        c = f * c + i * g
        h = o * jnp.tanh(c)
        return (h, c), h

    h0 = jnp.zeros((B, H), jnp.float32)
    (_, _), hs = lax.scan(step, (h0, h0), xs)
    hiddens = jnp.transpose(hs, (1, 0, 2))
    logits = hiddens.reshape(B * (T + 1), H) @ params["w_fc"] + params["b_fc"]
    return logits.reshape(B, T + 1, -1)


# ----------------------------- main ----------------------------------------

if __name__ == "__main__":
    B, Cin, IH, IW = 2, 3, 16, 16
    T = 8
    embed_size, hidden_size, vocab_size = 32, 32, 64

    key = jax.random.PRNGKey(0)
    k_img, k_cap, k_par = jax.random.split(key, 3)

    images = jax.random.normal(k_img, (B, Cin, IH, IW), jnp.float32)   # NCHW (PyTorch)
    captions = jax.random.randint(k_cap, (B, T), 0, vocab_size, jnp.int32)
    params = init_params(k_par, embed_size, hidden_size, vocab_size,
                         in_channels=Cin, conv_channels=8)

    out = caption_model_forward(params, images, captions)
    out = jax.block_until_ready(out)
    assert out.shape == (B, T + 1, vocab_size), out.shape

    ref = jax.block_until_ready(reference_forward(params, images, captions))
    # Kernel uses bf16 matmul operands (f32 accumulation); reference is pure f32.
    np.testing.assert_allclose(np.asarray(out), np.asarray(ref), rtol=3e-2, atol=5e-3)

    print("KERNEL_OK")
</pallas_src>

<mosaic_0001>
module attributes {stable_mosaic.version = 11 : i64} {
  func.func @_encoder_kernel(%arg0: i32, %arg1: memref<2048x32xbf16, #tpu.memory_space<vmem>>, %arg2: memref<32x128xbf16, #tpu.memory_space<vmem>>, %arg3: memref<1x128xf32, #tpu.memory_space<vmem>>, %arg4: memref<128x128xbf16, #tpu.memory_space<vmem>>, %arg5: memref<1x128xf32, #tpu.memory_space<vmem>>, %arg6: memref<8x128xf32, #tpu.memory_space<vmem>>) attributes {dimension_semantics = [#tpu.dimension_semantics<arbitrary>], iteration_bounds = array<i64: 1>, scalar_prefetch = 0 : i64, scratch_operands = 0 : i64, tpu.core_type = #tpu.core_type<tc>, window_params = [{pipeline_mode = #tpu.pipeline_mode<synchronous>, transform_indices = @transform_0, window_bounds = array<i64: 2048, 32>}, {pipeline_mode = #tpu.pipeline_mode<synchronous>, transform_indices = @transform_1, window_bounds = array<i64: 32, 128>}, {pipeline_mode = #tpu.pipeline_mode<synchronous>, transform_indices = @transform_2, window_bounds = array<i64: 1, 128>}, {pipeline_mode = #tpu.pipeline_mode<synchronous>, transform_indices = @transform_3, window_bounds = array<i64: 128, 128>}, {pipeline_mode = #tpu.pipeline_mode<synchronous>, transform_indices = @transform_4, window_bounds = array<i64: 1, 128>}, {pipeline_mode = #tpu.pipeline_mode<synchronous>, transform_indices = @transform_5, window_bounds = array<i64: 8, 128>}]} {
    %c0 = arith.constant 0 : index
    %c0_0 = arith.constant 0 : index
    %0 = vector.load %arg1[%c0, %c0_0] : memref<2048x32xbf16, #tpu.memory_space<vmem>>, vector<2048x32xbf16>
    %c0_1 = arith.constant 0 : index
    %c0_2 = arith.constant 0 : index
    %1 = vector.load %arg2[%c0_1, %c0_2] : memref<32x128xbf16, #tpu.memory_space<vmem>>, vector<32x128xbf16>
    %cst = arith.constant dense<0.000000e+00> : vector<2048x128xf32>
    %2 = tpu.matmul %0, %1, %cst {dimension_numbers = #tpu.dot_dimension_numbers<[1], [0], [0], [1], [0, 0, 1, 1], [], []>} : vector<2048x32xbf16>, vector<32x128xbf16>, vector<2048x128xf32> -> vector<2048x128xf32>
    %c0_3 = arith.constant 0 : index
    %c0_4 = arith.constant 0 : index
    %3 = vector.load %arg3[%c0_3, %c0_4] : memref<1x128xf32, #tpu.memory_space<vmem>>, vector<1x128xf32>
    %4 = vector.broadcast %3 : vector<1x128xf32> to vector<2048x128xf32>
    %5 = arith.addf %2, %4 : vector<2048x128xf32>
    %cst_5 = arith.constant 0.000000e+00 : f32
    %6 = vector.broadcast %cst_5 : f32 to vector<2048x128xf32>
    %7 = arith.maximumf %5, %6 : vector<2048x128xf32>
    %8 = vector.shape_cast %7 : vector<2048x128xf32> to vector<8x256x128xf32>
    %cst_6 = arith.constant dense<0.000000e+00> : vector<8x128xf32>
    %9 = vector.multi_reduction <add>, %8, %cst_6 [1] : vector<8x256x128xf32> to vector<8x128xf32>
    %cst_7 = arith.constant 2.560000e+02 : f32
    %10 = vector.broadcast %cst_7 : f32 to vector<8x128xf32>
    %11 = arith.divf %9, %10 : vector<8x128xf32>
    %12 = arith.truncf %11 : vector<8x128xf32> to vector<8x128xbf16>
    %c0_8 = arith.constant 0 : index
    %c0_9 = arith.constant 0 : index
    %13 = vector.load %arg4[%c0_8, %c0_9] : memref<128x128xbf16, #tpu.memory_space<vmem>>, vector<128x128xbf16>
    %cst_10 = arith.constant dense<0.000000e+00> : vector<8x128xf32>
    %14 = tpu.matmul %12, %13, %cst_10 {dimension_numbers = #tpu.dot_dimension_numbers<[1], [0], [0], [1], [0, 0, 1, 1], [], []>} : vector<8x128xbf16>, vector<128x128xbf16>, vector<8x128xf32> -> vector<8x128xf32>
    %c0_11 = arith.constant 0 : index
    %c0_12 = arith.constant 0 : index
    %15 = vector.load %arg5[%c0_11, %c0_12] : memref<1x128xf32, #tpu.memory_space<vmem>>, vector<1x128xf32>
    %16 = vector.broadcast %15 : vector<1x128xf32> to vector<8x128xf32>
    %17 = arith.addf %14, %16 : vector<8x128xf32>
    %cst_13 = arith.constant 0.000000e+00 : f32
    %18 = vector.broadcast %cst_13 : f32 to vector<8x128xf32>
    %19 = arith.maximumf %17, %18 : vector<8x128xf32>
    %c0_14 = arith.constant 0 : index
    %c0_15 = arith.constant 0 : index
    %20 = vector.load %arg6[%c0_14, %c0_15] : memref<8x128xf32, #tpu.memory_space<vmem>>, vector<8x128xf32>
    tpu.vector_store %arg6[%c0_14, %c0_15], %19 {strides = array<i32>} : memref<8x128xf32, #tpu.memory_space<vmem>>, vector<8x128xf32>,
    return
  }
  func.func @transform_0(%arg0: i32) -> (i32, i32) {
    %c0_i32 = arith.constant 0 : i32
    %c0_i32_0 = arith.constant 0 : i32
    %c0_i32_1 = arith.constant 0 : i32
    return %c0_i32, %c0_i32_0 : i32, i32
  }
  func.func @transform_1(%arg0: i32) -> (i32, i32) {
    %c0_i32 = arith.constant 0 : i32
    %c0_i32_0 = arith.constant 0 : i32
    %c0_i32_1 = arith.constant 0 : i32
    return %c0_i32, %c0_i32_0 : i32, i32
  }
  func.func @transform_2(%arg0: i32) -> (i32, i32) {
    %c0_i32 = arith.constant 0 : i32
    %c0_i32_0 = arith.constant 0 : i32
    %c0_i32_1 = arith.constant 0 : i32
    return %c0_i32, %c0_i32_0 : i32, i32
  }
  func.func @transform_3(%arg0: i32) -> (i32, i32) {
    %c0_i32 = arith.constant 0 : i32
    %c0_i32_0 = arith.constant 0 : i32
    %c0_i32_1 = arith.constant 0 : i32
    return %c0_i32, %c0_i32_0 : i32, i32
  }
  func.func @transform_4(%arg0: i32) -> (i32, i32) {
    %c0_i32 = arith.constant 0 : i32
    %c0_i32_0 = arith.constant 0 : i32
    %c0_i32_1 = arith.constant 0 : i32
    return %c0_i32, %c0_i32_0 : i32, i32
  }
  func.func @transform_5(%arg0: i32) -> (i32, i32) {
    %c0_i32 = arith.constant 0 : i32
    %c0_i32_0 = arith.constant 0 : i32
    %c0_i32_1 = arith.constant 0 : i32
    return %c0_i32, %c0_i32_0 : i32, i32
  }
}

</mosaic_0001>

<llo_original>
// kernel: tpu_custom_call.1
$region0: #{tpu_custom_call.1}
  #allocation0 [shape = 'u32[]', space=smem, size = 0x4, offset = 0x4, fixed_abs, tag = 'smem constant byte address 0x4 - core index']
  #allocation1 [shape = 'u32[144,128]{1,0:T(1,128)}', space=vmem, size = 0x12000, scoped, tag = 'internal scratch']
  %s0 = inlined_call_operand.vmem [shape: bf16[2048,32], index: 0, kind: input, shape index: {}]
  %s1 = inlined_call_operand.vmem [shape: bf16[32,128], index: 1, kind: input, shape index: {}]
  %s2 = inlined_call_operand.vmem [shape: f32[1,128], index: 2, kind: input, shape index: {}]
  %s3 = inlined_call_operand.vmem [shape: bf16[128,128], index: 3, kind: input, shape index: {}]
  %s4 = inlined_call_operand.vmem [shape: f32[1,128], index: 4, kind: input, shape index: {}]
  %s5 = inlined_call_operand.hbm [shape: f32[8,128], index: 5, kind: output, shape index: {}]
  %s6 = sld [smem:[#allocation0]]
  $region30: #{tpu_custom_call.1} parent=0
    _
  %s8 = ssub.s32 1, %s6
  %s9 = scalar_select 0, %s8, %s6
  $region1: #{tpu_custom_call.1} parent=0
    #allocation2 [shape = 'u8[4096]{0}', space=vmem, size = 0x1000, scoped, tag = 'output window, operand 0, single buffered']
    #allocation3 [shape = 's32[1]{0}', space=sflag, size = 0x4, scoped, tag = 'scoped memory for tpu_custom_call.1']
    %10 = vsyncpa [#allocation3], 0
    // Predicated region
    $region2: #{tpu_custom_call.1} parent=1 // pred_check
      _
    $region3: #{tpu_custom_call.1} parent=1 // pred_check_branch
      %12 = sbr.rel (0) target = $region5
    $region4: #{tpu_custom_call.1} parent=1 // pred_region
      _
    $region5: #{tpu_custom_call.1} parent=1 // pred_fallthru
      _
    // Predicated region
    $region6: #{tpu_custom_call.1} parent=1 // pred_check
      _
    $region7: #{tpu_custom_call.1} parent=1 // pred_check_branch
      %14 = sbr.rel (0) target = $region9
    $region8: #{tpu_custom_call.1} parent=1 // pred_region
      _
    $region9: #{tpu_custom_call.1} parent=1 // pred_fallthru
      _
    // Predicated region
    $region10: #{tpu_custom_call.1} parent=1 // pred_check
      _
    $region11: #{tpu_custom_call.1} parent=1 // pred_check_branch
      %16 = sbr.rel (0) target = $region13
    $region12: #{tpu_custom_call.1} parent=1 // pred_region
      _
    $region13: #{tpu_custom_call.1} parent=1 // pred_fallthru
      _
    // Predicated region
    $region14: #{tpu_custom_call.1} parent=1 // pred_check
      _
    $region15: #{tpu_custom_call.1} parent=1 // pred_check_branch
      %18 = sbr.rel (0) target = $region17
    $region16: #{tpu_custom_call.1} parent=1 // pred_region
      _
    $region17: #{tpu_custom_call.1} parent=1 // pred_fallthru
      _
    // Predicated region
    $region18: #{tpu_custom_call.1} parent=1 // pred_check
      _
    $region19: #{tpu_custom_call.1} parent=1 // pred_check_branch
      %20 = sbr.rel (0) target = $region21
    $region20: #{tpu_custom_call.1} parent=1 // pred_region
      _
    $region21: #{tpu_custom_call.1} parent=1 // pred_fallthru
      _
    %v22 = vld [vmem:[%s0] sm:$0xf]
    %v23 = vld [vmem:[%s0 + $0x4] sm:$0xf]
    %v24 = vld [vmem:[%s0 + $0x8] sm:$0xf]
    %v25 = vld [vmem:[%s0 + $0xc] sm:$0xf]
    %v26 = vld [vmem:[%s0 + $0x10] sm:$0xf]
    %v27 = vld [vmem:[%s0 + $0x14] sm:$0xf]
    %v28 = vld [vmem:[%s0 + $0x18] sm:$0xf]
    %v29 = vld [vmem:[%s0 + $0x1c] sm:$0xf]
    %v30 = vld [vmem:[%s0 + $0x20] sm:$0xf]
    %v31 = vld [vmem:[%s0 + $0x24] sm:$0xf]
    %v32 = vld [vmem:[%s0 + $0x28] sm:$0xf]
    %v33 = vld [vmem:[%s0 + $0x2c] sm:$0xf]
    %v34 = vld [vmem:[%s0 + $0x30] sm:$0xf]
    %v35 = vld [vmem:[%s0 + $0x34] sm:$0xf]
    %v36 = vld [vmem:[%s0 + $0x38] sm:$0xf]
    %v37 = vld [vmem:[%s0 + $0x3c] sm:$0xf]
    %v38 = vld [vmem:[%s0 + $0x40] sm:$0xf]
    %v39 = vld [vmem:[%s0 + $0x44] sm:$0xf]
    %v40 = vld [vmem:[%s0 + $0x48] sm:$0xf]
    %v41 = vld [vmem:[%s0 + $0x4c] sm:$0xf]
    %v42 = vld [vmem:[%s0 + $0x50] sm:$0xf]
    %v43 = vld [vmem:[%s0 + $0x54] sm:$0xf]
    %v44 = vld [vmem:[%s0 + $0x58] sm:$0xf]
    %v45 = vld [vmem:[%s0 + $0x5c] sm:$0xf]
    %v46 = vld [vmem:[%s0 + $0x60] sm:$0xf]
    %v47 = vld [vmem:[%s0 + $0x64] sm:$0xf]
    %v48 = vld [vmem:[%s0 + $0x68] sm:$0xf]
    %v49 = vld [vmem:[%s0 + $0x6c] sm:$0xf]
    %v50 = vld [vmem:[%s0 + $0x70] sm:$0xf]
    %v51 = vld [vmem:[%s0 + $0x74] sm:$0xf]
    %v52 = vld [vmem:[%s0 + $0x78] sm:$0xf]
    %v53 = vld [vmem:[%s0 + $0x7c] sm:$0xf]
    %v54 = vld [vmem:[%s0 + $0x80] sm:$0xf]
    %v55 = vld [vmem:[%s0 + $0x84] sm:$0xf]
    %v56 = vld [vmem:[%s0 + $0x88] sm:$0xf]
    %v57 = vld [vmem:[%s0 + $0x8c] sm:$0xf]
    %v58 = vld [vmem:[%s0 + $0x90] sm:$0xf]
    %v59 = vld [vmem:[%s0 + $0x94] sm:$0xf]
    %v60 = vld [vmem:[%s0 + $0x98] sm:$0xf]
    %v61 = vld [vmem:[%s0 + $0x9c] sm:$0xf]
    %v62 = vld [vmem:[%s0 + $0xa0] sm:$0xf]
    %v63 = vld [vmem:[%s0 + $0xa4] sm:$0xf]
    %v64 = vld [vmem:[%s0 + $0xa8] sm:$0xf]
    %v65 = vld [vmem:[%s0 + $0xac] sm:$0xf]
    %v66 = vld [vmem:[%s0 + $0xb0] sm:$0xf]
    %v67 = vld [vmem:[%s0 + $0xb4] sm:$0xf]
    %v68 = vld [vmem:[%s0 + $0xb8] sm:$0xf]
    %v69 = vld [vmem:[%s0 + $0xbc] sm:$0xf]
    %v70 = vld [vmem:[%s0 + $0xc0] sm:$0xf]
    %v71 = vld [vmem:[%s0 + $0xc4] sm:$0xf]
    %v72 = vld [vmem:[%s0 + $0xc8] sm:$0xf]
    %v73 = vld [vmem:[%s0 + $0xcc] sm:$0xf]
    %v74 = vld [vmem:[%s0 + $0xd0] sm:$0xf]
    %v75 = vld [vmem:[%s0 + $0xd4] sm:$0xf]
    %v76 = vld [vmem:[%s0 + $0xd8] sm:$0xf]
    %v77 = vld [vmem:[%s0 + $0xdc] sm:$0xf]
    %v78 = vld [vmem:[%s0 + $0xe0] sm:$0xf]
    %v79 = vld [vmem:[%s0 + $0xe4] sm:$0xf]
    %v80 = vld [vmem:[%s0 + $0xe8] sm:$0xf]
    %v81 = vld [vmem:[%s0 + $0xec] sm:$0xf]
    %v82 = vld [vmem:[%s0 + $0xf0] sm:$0xf]
    %v83 = vld [vmem:[%s0 + $0xf4] sm:$0xf]
    %v84 = vld [vmem:[%s0 + $0xf8] sm:$0xf]
    %v85 = vld [vmem:[%s0 + $0xfc] sm:$0xf]
    %v86 = vld [vmem:[%s0 + $0x100] sm:$0xf]
    %v87 = vld [vmem:[%s0 + $0x104] sm:$0xf]
    %v88 = vld [vmem:[%s0 + $0x108] sm:$0xf]
    %v89 = vld [vmem:[%s0 + $0x10c] sm:$0xf]
    %v90 = vld [vmem:[%s0 + $0x110] sm:$0xf]
    %v91 = vld [vmem:[%s0 + $0x114] sm:$0xf]
    %v92 = vld [vmem:[%s0 + $0x118] sm:$0xf]
    %v93 = vld [vmem:[%s0 + $0x11c] sm:$0xf]
    %v94 = vld [vmem:[%s0 + $0x120] sm:$0xf]
    %v95 = vld [vmem:[%s0 + $0x124] sm:$0xf]
    %v96 = vld [vmem:[%s0 + $0x128] sm:$0xf]
    %v97 = vld [vmem:[%s0 + $0x12c] sm:$0xf]
    %v98 = vld [vmem:[%s0 + $0x130] sm:$0xf]
    %v99 = vld [vmem:[%s0 + $0x134] sm:$0xf]
    %v100 = vld [vmem:[%s0 + $0x138] sm:$0xf]
    %v101 = vld [vmem:[%s0 + $0x13c] sm:$0xf]
    %v102 = vld [vmem:[%s0 + $0x140] sm:$0xf]
    %v103 = vld [vmem:[%s0 + $0x144] sm:$0xf]
    %v104 = vld [vmem:[%s0 + $0x148] sm:$0xf]
    %v105 = vld [vmem:[%s0 + $0x14c] sm:$0xf]
    %v106 = vld [vmem:[%s0 + $0x150] sm:$0xf]
    %v107 = vld [vmem:[%s0 + $0x154] sm:$0xf]
    %v108 = vld [vmem:[%s0 + $0x158] sm:$0xf]
    %v109 = vld [vmem:[%s0 + $0x15c] sm:$0xf]
    %v110 = vld [vmem:[%s0 + $0x160] sm:$0xf]
    %v111 = vld [vmem:[%s0 + $0x164] sm:$0xf]
    %v112 = vld [vmem:[%s0 + $0x168] sm:$0xf]
    %v113 = vld [vmem:[%s0 + $0x16c] sm:$0xf]
    %v114 = vld [vmem:[%s0 + $0x170] sm:$0xf]
    %v115 = vld [vmem:[%s0 + $0x174] sm:$0xf]
    %v116 = vld [vmem:[%s0 + $0x178] sm:$0xf]
    %v117 = vld [vmem:[%s0 + $0x17c] sm:$0xf]
    %v118 = vld [vmem:[%s0 + $0x180] sm:$0xf]
    %v119 = vld [vmem:[%s0 + $0x184] sm:$0xf]
    %v120 = vld [vmem:[%s0 + $0x188] sm:$0xf]
    %v121 = vld [vmem:[%s0 + $0x18c] sm:$0xf]
    %v122 = vld [vmem:[%s0 + $0x190] sm:$0xf]
    %v123 = vld [vmem:[%s0 + $0x194] sm:$0xf]
    %v124 = vld [vmem:[%s0 + $0x198] sm:$0xf]
    %v125 = vld [vmem:[%s0 + $0x19c] sm:$0xf]
    %v126 = vld [vmem:[%s0 + $0x1a0] sm:$0xf]
    %v127 = vld [vmem:[%s0 + $0x1a4] sm:$0xf]
    %v128 = vld [vmem:[%s0 + $0x1a8] sm:$0xf]
    %v129 = vld [vmem:[%s0 + $0x1ac] sm:$0xf]
    %v130 = vld [vmem:[%s0 + $0x1b0] sm:$0xf]
    %v131 = vld [vmem:[%s0 + $0x1b4] sm:$0xf]
    %v132 = vld [vmem:[%s0 + $0x1b8] sm:$0xf]
    %v133 = vld [vmem:[%s0 + $0x1bc] sm:$0xf]
    %v134 = vld [vmem:[%s0 + $0x1c0] sm:$0xf]
    %v135 = vld [vmem:[%s0 + $0x1c4] sm:$0xf]
    %v136 = vld [vmem:[%s0 + $0x1c8] sm:$0xf]
    %v137 = vld [vmem:[%s0 + $0x1cc] sm:$0xf]
    %v138 = vld [vmem:[%s0 + $0x1d0] sm:$0xf]
    %v139 = vld [vmem:[%s0 + $0x1d4] sm:$0xf]
    %v140 = vld [vmem:[%s0 + $0x1d8] sm:$0xf]
    %v141 = vld [vmem:[%s0 + $0x1dc] sm:$0xf]
    %v142 = vld [vmem:[%s0 + $0x1e0] sm:$0xf]
    %v143 = vld [vmem:[%s0 + $0x1e4] sm:$0xf]
    %v144 = vld [vmem:[%s0 + $0x1e8] sm:$0xf]
    %v145 = vld [vmem:[%s0 + $0x1ec] sm:$0xf]
    %v146 = vld [vmem:[%s0 + $0x1f0] sm:$0xf]
    %v147 = vld [vmem:[%s0 + $0x1f4] sm:$0xf]
    %v148 = vld [vmem:[%s0 + $0x1f8] sm:$0xf]
    %v149 = vld [vmem:[%s0 + $0x1fc] sm:$0xf]
    %v150 = vld [vmem:[%s0 + $0x200] sm:$0xf]
    %v151 = vld [vmem:[%s0 + $0x204] sm:$0xf]
    %v152 = vld [vmem:[%s0 + $0x208] sm:$0xf]
    %v153 = vld [vmem:[%s0 + $0x20c] sm:$0xf]
    %v154 = vld [vmem:[%s0 + $0x210] sm:$0xf]
    %v155 = vld [vmem:[%s0 + $0x214] sm:$0xf]
    %v156 = vld [vmem:[%s0 + $0x218] sm:$0xf]
    %v157 = vld [vmem:[%s0 + $0x21c] sm:$0xf]
    %v158 = vld [vmem:[%s0 + $0x220] sm:$0xf]
    %v159 = vld [vmem:[%s0 + $0x224] sm:$0xf]
    %v160 = vld [vmem:[%s0 + $0x228] sm:$0xf]
    %v161 = vld [vmem:[%s0 + $0x22c] sm:$0xf]
    %v162 = vld [vmem:[%s0 + $0x230] sm:$0xf]
    %v163 = vld [vmem:[%s0 + $0x234] sm:$0xf]
    %v164 = vld [vmem:[%s0 + $0x238] sm:$0xf]
    %v165 = vld [vmem:[%s0 + $0x23c] sm:$0xf]
    %v166 = vld [vmem:[%s0 + $0x240] sm:$0xf]
    %v167 = vld [vmem:[%s0 + $0x244] sm:$0xf]
    %v168 = vld [vmem:[%s0 + $0x248] sm:$0xf]
    %v169 = vld [vmem:[%s0 + $0x24c] sm:$0xf]
    %v170 = vld [vmem:[%s0 + $0x250] sm:$0xf]
    %v171 = vld [vmem:[%s0 + $0x254] sm:$0xf]
    %v172 = vld [vmem:[%s0 + $0x258] sm:$0xf]
    %v173 = vld [vmem:[%s0 + $0x25c] sm:$0xf]
    %v174 = vld [vmem:[%s0 + $0x260] sm:$0xf]
    %v175 = vld [vmem:[%s0 + $0x264] sm:$0xf]
    %v176 = vld [vmem:[%s0 + $0x268] sm:$0xf]
    %v177 = vld [vmem:[%s0 + $0x26c] sm:$0xf]
    %v178 = vld [vmem:[%s0 + $0x270] sm:$0xf]
    %v179 = vld [vmem:[%s0 + $0x274] sm:$0xf]
    %v180 = vld [vmem:[%s0 + $0x278] sm:$0xf]
    %v181 = vld [vmem:[%s0 + $0x27c] sm:$0xf]
    %v182 = vld [vmem:[%s0 + $0x280] sm:$0xf]
    %v183 = vld [vmem:[%s0 + $0x284] sm:$0xf]
    %v184 = vld [vmem:[%s0 + $0x288] sm:$0xf]
    %v185 = vld [vmem:[%s0 + $0x28c] sm:$0xf]
    %v186 = vld [vmem:[%s0 + $0x290] sm:$0xf]
    %v187 = vld [vmem:[%s0 + $0x294] sm:$0xf]
    %v188 = vld [vmem:[%s0 + $0x298] sm:$0xf]
    %v189 = vld [vmem:[%s0 + $0x29c] sm:$0xf]
    %v190 = vld [vmem:[%s0 + $0x2a0] sm:$0xf]
    %v191 = vld [vmem:[%s0 + $0x2a4] sm:$0xf]
    %v192 = vld [vmem:[%s0 + $0x2a8] sm:$0xf]
    %v193 = vld [vmem:[%s0 + $0x2ac] sm:$0xf]
    %v194 = vld [vmem:[%s0 + $0x2b0] sm:$0xf]
    %v195 = vld [vmem:[%s0 + $0x2b4] sm:$0xf]
    %v196 = vld [vmem:[%s0 + $0x2b8] sm:$0xf]
    %v197 = vld [vmem:[%s0 + $0x2bc] sm:$0xf]
    %v198 = vld [vmem:[%s0 + $0x2c0] sm:$0xf]
    %v199 = vld [vmem:[%s0 + $0x2c4] sm:$0xf]
    %v200 = vld [vmem:[%s0 + $0x2c8] sm:$0xf]
    %v201 = vld [vmem:[%s0 + $0x2cc] sm:$0xf]
    %v202 = vld [vmem:[%s0 + $0x2d0] sm:$0xf]
    %v203 = vld [vmem:[%s0 + $0x2d4] sm:$0xf]
    %v204 = vld [vmem:[%s0 + $0x2d8] sm:$0xf]
    %v205 = vld [vmem:[%s0 + $0x2dc] sm:$0xf]
    %v206 = vld [vmem:[%s0 + $0x2e0] sm:$0xf]
    %v207 = vld [vmem:[%s0 + $0x2e4] sm:$0xf]
    %v208 = vld [vmem:[%s0 + $0x2e8] sm:$0xf]
    %v209 = vld [vmem:[%s0 + $0x2ec] sm:$0xf]
    %v210 = vld [vmem:[%s0 + $0x2f0] sm:$0xf]
    %v211 = vld [vmem:[%s0 + $0x2f4] sm:$0xf]
    %v212 = vld [vmem:[%s0 + $0x2f8] sm:$0xf]
    %v213 = vld [vmem:[%s0 + $0x2fc] sm:$0xf]
    %v214 = vld [vmem:[%s0 + $0x300] sm:$0xf]
    %v215 = vld [vmem:[%s0 + $0x304] sm:$0xf]
    %v216 = vld [vmem:[%s0 + $0x308] sm:$0xf]
    %v217 = vld [vmem:[%s0 + $0x30c] sm:$0xf]
    %v218 = vld [vmem:[%s0 + $0x310] sm:$0xf]
    %v219 = vld [vmem:[%s0 + $0x314] sm:$0xf]
    %v220 = vld [vmem:[%s0 + $0x318] sm:$0xf]
    %v221 = vld [vmem:[%s0 + $0x31c] sm:$0xf]
    %v222 = vld [vmem:[%s0 + $0x320] sm:$0xf]
    %v223 = vld [vmem:[%s0 + $0x324] sm:$0xf]
    %v224 = vld [vmem:[%s0 + $0x328] sm:$0xf]
    %v225 = vld [vmem:[%s0 + $0x32c] sm:$0xf]
    %v226 = vld [vmem:[%s0 + $0x330] sm:$0xf]
    %v227 = vld [vmem:[%s0 + $0x334] sm:$0xf]
    %v228 = vld [vmem:[%s0 + $0x338] sm:$0xf]
    %v229 = vld [vmem:[%s0 + $0x33c] sm:$0xf]
    %v230 = vld [vmem:[%s0 + $0x340] sm:$0xf]
    %v231 = vld [vmem:[%s0 + $0x344] sm:$0xf]
    %v232 = vld [vmem:[%s0 + $0x348] sm:$0xf]
    %v233 = vld [vmem:[%s0 + $0x34c] sm:$0xf]
    %v234 = vld [vmem:[%s0 + $0x350] sm:$0xf]
    %v235 = vld [vmem:[%s0 + $0x354] sm:$0xf]
    %v236 = vld [vmem:[%s0 + $0x358] sm:$0xf]
    %v237 = vld [vmem:[%s0 + $0x35c] sm:$0xf]
    %v238 = vld [vmem:[%s0 + $0x360] sm:$0xf]
    %v239 = vld [vmem:[%s0 + $0x364] sm:$0xf]
    %v240 = vld [vmem:[%s0 + $0x368] sm:$0xf]
    %v241 = vld [vmem:[%s0 + $0x36c] sm:$0xf]
    %v242 = vld [vmem:[%s0 + $0x370] sm:$0xf]
    %v243 = vld [vmem:[%s0 + $0x374] sm:$0xf]
    %v244 = vld [vmem:[%s0 + $0x378] sm:$0xf]
    %v245 = vld [vmem:[%s0 + $0x37c] sm:$0xf]
    %v246 = vld [vmem:[%s0 + $0x380] sm:$0xf]
    %v247 = vld [vmem:[%s0 + $0x384] sm:$0xf]
    %v248 = vld [vmem:[%s0 + $0x388] sm:$0xf]
    %v249 = vld [vmem:[%s0 + $0x38c] sm:$0xf]
    %v250 = vld [vmem:[%s0 + $0x390] sm:$0xf]
    %v251 = vld [vmem:[%s0 + $0x394] sm:$0xf]
    %v252 = vld [vmem:[%s0 + $0x398] sm:$0xf]
    %v253 = vld [vmem:[%s0 + $0x39c] sm:$0xf]
    %v254 = vld [vmem:[%s0 + $0x3a0] sm:$0xf]
    %v255 = vld [vmem:[%s0 + $0x3a4] sm:$0xf]
    %v256 = vld [vmem:[%s0 + $0x3a8] sm:$0xf]
    %v257 = vld [vmem:[%s0 + $0x3ac] sm:$0xf]
    %v258 = vld [vmem:[%s0 + $0x3b0] sm:$0xf]
    %v259 = vld [vmem:[%s0 + $0x3b4] sm:$0xf]
    %v260 = vld [vmem:[%s0 + $0x3b8] sm:$0xf]
    %v261 = vld [vmem:[%s0 + $0x3bc] sm:$0xf]
    %v262 = vld [vmem:[%s0 + $0x3c0] sm:$0xf]
    %v263 = vld [vmem:[%s0 + $0x3c4] sm:$0xf]
    %v264 = vld [vmem:[%s0 + $0x3c8] sm:$0xf]
    %v265 = vld [vmem:[%s0 + $0x3cc] sm:$0xf]
    %v266 = vld [vmem:[%s0 + $0x3d0] sm:$0xf]
    %v267 = vld [vmem:[%s0 + $0x3d4] sm:$0xf]
    %v268 = vld [vmem:[%s0 + $0x3d8] sm:$0xf]
    %v269 = vld [vmem:[%s0 + $0x3dc] sm:$0xf]
    %v270 = vld [vmem:[%s0 + $0x3e0] sm:$0xf]
    %v271 = vld [vmem:[%s0 + $0x3e4] sm:$0xf]
    %v272 = vld [vmem:[%s0 + $0x3e8] sm:$0xf]
    %v273 = vld [vmem:[%s0 + $0x3ec] sm:$0xf]
    %v274 = vld [vmem:[%s0 + $0x3f0] sm:$0xf]
    %v275 = vld [vmem:[%s0 + $0x3f4] sm:$0xf]
    %v276 = vld [vmem:[%s0 + $0x3f8] sm:$0xf]
    %v277 = vld [vmem:[%s0 + $0x3fc] sm:$0xf]
    %v278 = vld [vmem:[%s1] sm:$0xf]
    %v279 = vld [vmem:[%s1 + $0x4] sm:$0xf]
    %v280 = vld [vmem:[%s1 + $0x8] sm:$0xf]
    %v281 = vld [vmem:[%s1 + $0xc] sm:$0xf]
    %v282 = vld [vmem:[%s2] sm:$0x1]
    %v284 = vlaneseq
    %v285 = vshrl.u32 %v284, 7
    %v286 = vsub.s32 0, %v285
    %v287 = vrot.slane %v282, %v286
    %v545 = vunpack.c.l.b16 %v22
    %v546 = vunpack.c.l.b16 %v23
    %v547 = vunpack.c.l.b16 %v24
    %v548 = vunpack.c.l.b16 %v25
    %v549 = vunpack.c.l.b16 %v26
    %v550 = vunpack.c.l.b16 %v27
    %v551 = vunpack.c.l.b16 %v28
    %v552 = vunpack.c.l.b16 %v29
    %v553 = vunpack.c.l.b16 %v30
    %v554 = vunpack.c.l.b16 %v31
    %v555 = vunpack.c.l.b16 %v32
    %v556 = vunpack.c.l.b16 %v33
    %v557 = vunpack.c.l.b16 %v34
    %v558 = vunpack.c.l.b16 %v35
    %v559 = vunpack.c.l.b16 %v36
    %v560 = vunpack.c.l.b16 %v37
    %v561 = vunpack.c.l.b16 %v38
    %v562 = vunpack.c.l.b16 %v39
    %v563 = vunpack.c.l.b16 %v40
    %v564 = vunpack.c.l.b16 %v41
    %v565 = vunpack.c.l.b16 %v42
    %v566 = vunpack.c.l.b16 %v43
    %v567 = vunpack.c.l.b16 %v44
    %v568 = vunpack.c.l.b16 %v45
    %v569 = vunpack.c.l.b16 %v46
    %v570 = vunpack.c.l.b16 %v47
    %v571 = vunpack.c.l.b16 %v48
    %v572 = vunpack.c.l.b16 %v49
    %v573 = vunpack.c.l.b16 %v50
    %v574 = vunpack.c.l.b16 %v51
    %v575 = vunpack.c.l.b16 %v52
    %v576 = vunpack.c.l.b16 %v53
    %v577 = vunpack.c.l.b16 %v54
    %v578 = vunpack.c.l.b16 %v55
    %v579 = vunpack.c.l.b16 %v56
    %v580 = vunpack.c.l.b16 %v57
    %v581 = vunpack.c.l.b16 %v58
    %v582 = vunpack.c.l.b16 %v59
    %v583 = vunpack.c.l.b16 %v60
    %v584 = vunpack.c.l.b16 %v61
    %v585 = vunpack.c.l.b16 %v62
    %v586 = vunpack.c.l.b16 %v63
    %v587 = vunpack.c.l.b16 %v64
    %v588 = vunpack.c.l.b16 %v65
    %v589 = vunpack.c.l.b16 %v66
    %v590 = vunpack.c.l.b16 %v67
    %v591 = vunpack.c.l.b16 %v68
    %v592 = vunpack.c.l.b16 %v69
    %v593 = vunpack.c.l.b16 %v70
    %v594 = vunpack.c.l.b16 %v71
    %v595 = vunpack.c.l.b16 %v72
    %v596 = vunpack.c.l.b16 %v73
    %v597 = vunpack.c.l.b16 %v74
    %v598 = vunpack.c.l.b16 %v75
    %v599 = vunpack.c.l.b16 %v76
    %v600 = vunpack.c.l.b16 %v77
    %v601 = vunpack.c.l.b16 %v78
    %v602 = vunpack.c.l.b16 %v79
    %v603 = vunpack.c.l.b16 %v80
    %v604 = vunpack.c.l.b16 %v81
    %v605 = vunpack.c.l.b16 %v82
    %v606 = vunpack.c.l.b16 %v83
    %v607 = vunpack.c.l.b16 %v84
    %v608 = vunpack.c.l.b16 %v85
    %v609 = vunpack.c.l.b16 %v86
    %v610 = vunpack.c.l.b16 %v87
    %v611 = vunpack.c.l.b16 %v88
    %v612 = vunpack.c.l.b16 %v89
    %v613 = vunpack.c.l.b16 %v90
    %v614 = vunpack.c.l.b16 %v91
    %v615 = vunpack.c.l.b16 %v92
    %v616 = vunpack.c.l.b16 %v93
    %v617 = vunpack.c.l.b16 %v94
    %v618 = vunpack.c.l.b16 %v95
    %v619 = vunpack.c.l.b16 %v96
    %v620 = vunpack.c.l.b16 %v97
    %v621 = vunpack.c.l.b16 %v98
    %v622 = vunpack.c.l.b16 %v99
    %v623 = vunpack.c.l.b16 %v100
    %v624 = vunpack.c.l.b16 %v101
    %v625 = vunpack.c.l.b16 %v102
    %v626 = vunpack.c.l.b16 %v103
    %v627 = vunpack.c.l.b16 %v104
    %v628 = vunpack.c.l.b16 %v105
    %v629 = vunpack.c.l.b16 %v106
    %v630 = vunpack.c.l.b16 %v107
    %v631 = vunpack.c.l.b16 %v108
    %v632 = vunpack.c.l.b16 %v109
    %v633 = vunpack.c.l.b16 %v110
    %v634 = vunpack.c.l.b16 %v111
    %v635 = vunpack.c.l.b16 %v112
    %v636 = vunpack.c.l.b16 %v113
    %v637 = vunpack.c.l.b16 %v114
    %v638 = vunpack.c.l.b16 %v115
    %v639 = vunpack.c.l.b16 %v116
    %v640 = vunpack.c.l.b16 %v117
    %v641 = vunpack.c.l.b16 %v118
    %v642 = vunpack.c.l.b16 %v119
    %v643 = vunpack.c.l.b16 %v120
    %v644 = vunpack.c.l.b16 %v121
    %v645 = vunpack.c.l.b16 %v122
    %v646 = vunpack.c.l.b16 %v123
    %v647 = vunpack.c.l.b16 %v124
    %v648 = vunpack.c.l.b16 %v125
    %v649 = vunpack.c.l.b16 %v126
    %v650 = vunpack.c.l.b16 %v127
    %v651 = vunpack.c.l.b16 %v128
    %v652 = vunpack.c.l.b16 %v129
    %v653 = vunpack.c.l.b16 %v130
    %v654 = vunpack.c.l.b16 %v131
    %v655 = vunpack.c.l.b16 %v132
    %v656 = vunpack.c.l.b16 %v133
    %v657 = vunpack.c.l.b16 %v134
    %v658 = vunpack.c.l.b16 %v135
    %v659 = vunpack.c.l.b16 %v136
    %v660 = vunpack.c.l.b16 %v137
    %v661 = vunpack.c.l.b16 %v138
    %v662 = vunpack.c.l.b16 %v139
    %v663 = vunpack.c.l.b16 %v140
    %v664 = vunpack.c.l.b16 %v141
    %v665 = vunpack.c.l.b16 %v142
    %v666 = vunpack.c.l.b16 %v143
    %v667 = vunpack.c.l.b16 %v144
    %v668 = vunpack.c.l.b16 %v145
    %v669 = vunpack.c.l.b16 %v146
    %v670 = vunpack.c.l.b16 %v147
    %v671 = vunpack.c.l.b16 %v148
    %v672 = vunpack.c.l.b16 %v149
    %v673 = vunpack.c.l.b16 %v150
    %v674 = vunpack.c.l.b16 %v151
    %v675 = vunpack.c.l.b16 %v152
    %v676 = vunpack.c.l.b16 %v153
    %v677 = vunpack.c.l.b16 %v154
    %v678 = vunpack.c.l.b16 %v155
    %v679 = vunpack.c.l.b16 %v156
    %v680 = vunpack.c.l.b16 %v157
    %v681 = vunpack.c.l.b16 %v158
    %v682 = vunpack.c.l.b16 %v159
    %v683 = vunpack.c.l.b16 %v160
    %v684 = vunpack.c.l.b16 %v161
    %v685 = vunpack.c.l.b16 %v162
    %v686 = vunpack.c.l.b16 %v163
    %v687 = vunpack.c.l.b16 %v164
    %v688 = vunpack.c.l.b16 %v165
    %v689 = vunpack.c.l.b16 %v166
    %v690 = vunpack.c.l.b16 %v167
    %v691 = vunpack.c.l.b16 %v168
    %v692 = vunpack.c.l.b16 %v169
    %v693 = vunpack.c.l.b16 %v170
    %v694 = vunpack.c.l.b16 %v171
    %v695 = vunpack.c.l.b16 %v172
    %v696 = vunpack.c.l.b16 %v173
    %v697 = vunpack.c.l.b16 %v174
    %v698 = vunpack.c.l.b16 %v175
    %v699 = vunpack.c.l.b16 %v176
    %v700 = vunpack.c.l.b16 %v177
    %v701 = vunpack.c.l.b16 %v178
    %v702 = vunpack.c.l.b16 %v179
    %v703 = vunpack.c.l.b16 %v180
    %v704 = vunpack.c.l.b16 %v181
    %v705 = vunpack.c.l.b16 %v182
    %v706 = vunpack.c.l.b16 %v183
    %v707 = vunpack.c.l.b16 %v184
    %v708 = vunpack.c.l.b16 %v185
    %v709 = vunpack.c.l.b16 %v186
    %v710 = vunpack.c.l.b16 %v187
    %v711 = vunpack.c.l.b16 %v188
    %v712 = vunpack.c.l.b16 %v189
    %v713 = vunpack.c.l.b16 %v190
    %v714 = vunpack.c.l.b16 %v191
    %v715 = vunpack.c.l.b16 %v192
    %v716 = vunpack.c.l.b16 %v193
    %v717 = vunpack.c.l.b16 %v194
    %v718 = vunpack.c.l.b16 %v195
    %v719 = vunpack.c.l.b16 %v196
    %v720 = vunpack.c.l.b16 %v197
    %v721 = vunpack.c.l.b16 %v198
    %v722 = vunpack.c.l.b16 %v199
    %v723 = vunpack.c.l.b16 %v200
    %v724 = vunpack.c.l.b16 %v201
    %v725 = vunpack.c.l.b16 %v202
    %v726 = vunpack.c.l.b16 %v203
    %v727 = vunpack.c.l.b16 %v204
    %v728 = vunpack.c.l.b16 %v205
    %v729 = vunpack.c.l.b16 %v206
    %v730 = vunpack.c.l.b16 %v207
    %v731 = vunpack.c.l.b16 %v208
    %v732 = vunpack.c.l.b16 %v209
    %v733 = vunpack.c.l.b16 %v210
    %v734 = vunpack.c.l.b16 %v211
    %v735 = vunpack.c.l.b16 %v212
    %v736 = vunpack.c.l.b16 %v213
    %v737 = vunpack.c.l.b16 %v214
    %v738 = vunpack.c.l.b16 %v215
    %v739 = vunpack.c.l.b16 %v216
    %v740 = vunpack.c.l.b16 %v217
    %v741 = vunpack.c.l.b16 %v218
    %v742 = vunpack.c.l.b16 %v219
    %v743 = vunpack.c.l.b16 %v220
    %v744 = vunpack.c.l.b16 %v221
    %v745 = vunpack.c.l.b16 %v222
    %v746 = vunpack.c.l.b16 %v223
    %v747 = vunpack.c.l.b16 %v224
    %v748 = vunpack.c.l.b16 %v225
    %v749 = vunpack.c.l.b16 %v226
    %v750 = vunpack.c.l.b16 %v227
    %v751 = vunpack.c.l.b16 %v228
    %v752 = vunpack.c.l.b16 %v229
    %v753 = vunpack.c.l.b16 %v230
    %v754 = vunpack.c.l.b16 %v231
    %v755 = vunpack.c.l.b16 %v232
    %v756 = vunpack.c.l.b16 %v233
    %v757 = vunpack.c.l.b16 %v234
    %v758 = vunpack.c.l.b16 %v235
    %v759 = vunpack.c.l.b16 %v236
    %v760 = vunpack.c.l.b16 %v237
    %v761 = vunpack.c.l.b16 %v238
    %v762 = vunpack.c.l.b16 %v239
    %v763 = vunpack.c.l.b16 %v240
    %v764 = vunpack.c.l.b16 %v241
    %v765 = vunpack.c.l.b16 %v242
    %v766 = vunpack.c.l.b16 %v243
    %v767 = vunpack.c.l.b16 %v244
    %v768 = vunpack.c.l.b16 %v245
    %v769 = vunpack.c.l.b16 %v246
    %v770 = vunpack.c.l.b16 %v247
    %v771 = vunpack.c.l.b16 %v248
    %v772 = vunpack.c.l.b16 %v249
    %v773 = vunpack.c.l.b16 %v250
    %v774 = vunpack.c.l.b16 %v251
    %v775 = vunpack.c.l.b16 %v252
    %v776 = vunpack.c.l.b16 %v253
    %v777 = vunpack.c.l.b16 %v254
    %v778 = vunpack.c.l.b16 %v255
    %v779 = vunpack.c.l.b16 %v256
    %v780 = vunpack.c.l.b16 %v257
    %v781 = vunpack.c.l.b16 %v258
    %v782 = vunpack.c.l.b16 %v259
    %v783 = vunpack.c.l.b16 %v260
    %v784 = vunpack.c.l.b16 %v261
    %v785 = vunpack.c.l.b16 %v262
    %v786 = vunpack.c.l.b16 %v263
    %v787 = vunpack.c.l.b16 %v264
    %v788 = vunpack.c.l.b16 %v265
    %v789 = vunpack.c.l.b16 %v266
    %v790 = vunpack.c.l.b16 %v267
    %v791 = vunpack.c.l.b16 %v268
    %v792 = vunpack.c.l.b16 %v269
    %v793 = vunpack.c.l.b16 %v270
    %v794 = vunpack.c.l.b16 %v271
    %v795 = vunpack.c.l.b16 %v272
    %v796 = vunpack.c.l.b16 %v273
    %v797 = vunpack.c.l.b16 %v274
    %v798 = vunpack.c.l.b16 %v275
    %v799 = vunpack.c.l.b16 %v276
    %v800 = vunpack.c.l.b16 %v277
    %v801 = vpack.c.b16 %v546, %v545
    %v802 = vpack.c.b16 %v548, %v547
    %v803 = vpack.c.b16 %v550, %v549
    %v804 = vpack.c.b16 %v552, %v551
    %v805 = vpack.c.b16 %v554, %v553
    %v806 = vpack.c.b16 %v556, %v555
    %v807 = vpack.c.b16 %v558, %v557
    %v808 = vpack.c.b16 %v560, %v559
    %v809 = vpack.c.b16 %v562, %v561
    %v810 = vpack.c.b16 %v564, %v563
    %v811 = vpack.c.b16 %v566, %v565
    %v812 = vpack.c.b16 %v568, %v567
    %v813 = vpack.c.b16 %v570, %v569
    %v814 = vpack.c.b16 %v572, %v571
    %v815 = vpack.c.b16 %v574, %v573
    %v816 = vpack.c.b16 %v576, %v575
    %v817 = vpack.c.b16 %v578, %v577
    %v818 = vpack.c.b16 %v580, %v579
    %v819 = vpack.c.b16 %v582, %v581
    %v820 = vpack.c.b16 %v584, %v583
    %v821 = vpack.c.b16 %v586, %v585
    %v822 = vpack.c.b16 %v588, %v587
    %v823 = vpack.c.b16 %v590, %v589
    %v824 = vpack.c.b16 %v592, %v591
    %v825 = vpack.c.b16 %v594, %v593
    %v826 = vpack.c.b16 %v596, %v595
    %v827 = vpack.c.b16 %v598, %v597
    %v828 = vpack.c.b16 %v600, %v599
    %v829 = vpack.c.b16 %v602, %v601
    %v830 = vpack.c.b16 %v604, %v603
    %v831 = vpack.c.b16 %v606, %v605
    %v832 = vpack.c.b16 %v608, %v607
    %v833 = vpack.c.b16 %v610, %v609
    %v834 = vpack.c.b16 %v612, %v611
    %v835 = vpack.c.b16 %v614, %v613
    %v836 = vpack.c.b16 %v616, %v615
    %v837 = vpack.c.b16 %v618, %v617
    %v838 = vpack.c.b16 %v620, %v619
    %v839 = vpack.c.b16 %v622, %v621
    %v840 = vpack.c.b16 %v624, %v623
    %v841 = vpack.c.b16 %v626, %v625
    %v842 = vpack.c.b16 %v628, %v627
    %v843 = vpack.c.b16 %v630, %v629
    %v844 = vpack.c.b16 %v632, %v631
    %v845 = vpack.c.b16 %v634, %v633
    %v846 = vpack.c.b16 %v636, %v635
    %v847 = vpack.c.b16 %v638, %v637
    %v848 = vpack.c.b16 %v640, %v639
    %v849 = vpack.c.b16 %v642, %v641
    %v850 = vpack.c.b16 %v644, %v643
    %v851 = vpack.c.b16 %v646, %v645
    %v852 = vpack.c.b16 %v648, %v647
    %v853 = vpack.c.b16 %v650, %v649
    %v854 = vpack.c.b16 %v652, %v651
    %v855 = vpack.c.b16 %v654, %v653
    %v856 = vpack.c.b16 %v656, %v655
    %v857 = vpack.c.b16 %v658, %v657
    %v858 = vpack.c.b16 %v660, %v659
    %v859 = vpack.c.b16 %v662, %v661
    %v860 = vpack.c.b16 %v664, %v663
    %v861 = vpack.c.b16 %v666, %v665
    %v862 = vpack.c.b16 %v668, %v667
    %v863 = vpack.c.b16 %v670, %v669
    %v864 = vpack.c.b16 %v672, %v671
    %v865 = vpack.c.b16 %v674, %v673
    %v866 = vpack.c.b16 %v676, %v675
    %v867 = vpack.c.b16 %v678, %v677
    %v868 = vpack.c.b16 %v680, %v679
    %v869 = vpack.c.b16 %v682, %v681
    %v870 = vpack.c.b16 %v684, %v683
    %v871 = vpack.c.b16 %v686, %v685
    %v872 = vpack.c.b16 %v688, %v687
    %v873 = vpack.c.b16 %v690, %v689
    %v874 = vpack.c.b16 %v692, %v691
    %v875 = vpack.c.b16 %v694, %v693
    %v876 = vpack.c.b16 %v696, %v695
    %v877 = vpack.c.b16 %v698, %v697
    %v878 = vpack.c.b16 %v700, %v699
    %v879 = vpack.c.b16 %v702, %v701
    %v880 = vpack.c.b16 %v704, %v703
    %v881 = vpack.c.b16 %v706, %v705
    %v882 = vpack.c.b16 %v708, %v707
    %v883 = vpack.c.b16 %v710, %v709
    %v884 = vpack.c.b16 %v712, %v711
    %v885 = vpack.c.b16 %v714, %v713
    %v886 = vpack.c.b16 %v716, %v715
    %v887 = vpack.c.b16 %v718, %v717
    %v888 = vpack.c.b16 %v720, %v719
    %v889 = vpack.c.b16 %v722, %v721
    %v890 = vpack.c.b16 %v724, %v723
    %v891 = vpack.c.b16 %v726, %v725
    %v892 = vpack.c.b16 %v728, %v727
    %v893 = vpack.c.b16 %v730, %v729
    %v894 = vpack.c.b16 %v732, %v731
    %v895 = vpack.c.b16 %v734, %v733
    %v896 = vpack.c.b16 %v736, %v735
    %v897 = vpack.c.b16 %v738, %v737
    %v898 = vpack.c.b16 %v740, %v739
    %v899 = vpack.c.b16 %v742, %v741
    %v900 = vpack.c.b16 %v744, %v743
    %v901 = vpack.c.b16 %v746, %v745
    %v902 = vpack.c.b16 %v748, %v747
    %v903 = vpack.c.b16 %v750, %v749
    %v904 = vpack.c.b16 %v752, %v751
    %v905 = vpack.c.b16 %v754, %v753
    %v906 = vpack.c.b16 %v756, %v755
    %v907 = vpack.c.b16 %v758, %v757
    %v908 = vpack.c.b16 %v760, %v759
    %v909 = vpack.c.b16 %v762, %v761
    %v910 = vpack.c.b16 %v764, %v763
    %v911 = vpack.c.b16 %v766, %v765
    %v912 = vpack.c.b16 %v768, %v767
    %v913 = vpack.c.b16 %v770, %v769
    %v914 = vpack.c.b16 %v772, %v771
    %v915 = vpack.c.b16 %v774, %v773
    %v916 = vpack.c.b16 %v776, %v775
    %v917 = vpack.c.b16 %v778, %v777
    %v918 = vpack.c.b16 %v780, %v779
    %v919 = vpack.c.b16 %v782, %v781
    %v920 = vpack.c.b16 %v784, %v783
    %v921 = vpack.c.b16 %v786, %v785
    %v922 = vpack.c.b16 %v788, %v787
    %v923 = vpack.c.b16 %v790, %v789
    %v924 = vpack.c.b16 %v792, %v791
    %v925 = vpack.c.b16 %v794, %v793
    %v926 = vpack.c.b16 %v796, %v795
    %v927 = vpack.c.b16 %v798, %v797
    %v928 = vpack.c.b16 %v800, %v799
    %v933 = vunpack.c.l.b16 %v278
    %v934 = vunpack.c.l.b16 %v279
    %v935 = vunpack.c.l.b16 %v280
    %v936 = vunpack.c.l.b16 %v281
    %v937 = vpack.c.b16 %v934, %v933
    %v938 = vpack.c.b16 %v936, %v935
    %vm941 = vcmask 261120
    %v943 = vsel %vm941, %v801, 0
    %v946 = vsel %vm941, %v802, 0
    %v949 = vsel %vm941, %v803, 0
    %v952 = vsel %vm941, %v804, 0
    %v955 = vsel %vm941, %v805, 0
    %v958 = vsel %vm941, %v806, 0
    %v961 = vsel %vm941, %v807, 0
    %v964 = vsel %vm941, %v808, 0
    %v967 = vsel %vm941, %v809, 0
    %v970 = vsel %vm941, %v810, 0
    %v973 = vsel %vm941, %v811, 0
    %v976 = vsel %vm941, %v812, 0
    %v979 = vsel %vm941, %v813, 0
    %v982 = vsel %vm941, %v814, 0
    %v985 = vsel %vm941, %v815, 0
    %v988 = vsel %vm941, %v816, 0
    %v991 = vsel %vm941, %v817, 0
    %v994 = vsel %vm941, %v818, 0
    %v997 = vsel %vm941, %v819, 0
    %v1000 = vsel %vm941, %v820, 0
    %v1003 = vsel %vm941, %v821, 0
    %v1006 = vsel %vm941, %v822, 0
    %v1009 = vsel %vm941, %v823, 0
    %v1012 = vsel %vm941, %v824, 0
    %v1015 = vsel %vm941, %v825, 0
    %v1018 = vsel %vm941, %v826, 0
    %v1021 = vsel %vm941, %v827, 0
    %v1024 = vsel %vm941, %v828, 0
    %v1027 = vsel %vm941, %v829, 0
    %v1030 = vsel %vm941, %v830, 0
    %v1033 = vsel %vm941, %v831, 0
    %v1036 = vsel %vm941, %v832, 0
    %v1039 = vsel %vm941, %v833, 0
    %v1042 = vsel %vm941, %v834, 0
    %v1045 = vsel %vm941, %v835, 0
    %v1048 = vsel %vm941, %v836, 0
    %v1051 = vsel %vm941, %v837, 0
    %v1054 = vsel %vm941, %v838, 0
    %v1057 = vsel %vm941, %v839, 0
    %v1060 = vsel %vm941, %v840, 0
    %v1063 = vsel %vm941, %v841, 0
    %v1066 = vsel %vm941, %v842, 0
    %v1069 = vsel %vm941, %v843, 0
    %v1072 = vsel %vm941, %v844, 0
    %v1075 = vsel %vm941, %v845, 0
    %v1078 = vsel %vm941, %v846, 0
    %v1081 = vsel %vm941, %v847, 0
    %v1084 = vsel %vm941, %v848, 0
    %v1087 = vsel %vm941, %v849, 0
    %v1090 = vsel %vm941, %v850, 0
    %v1093 = vsel %vm941, %v851, 0
    %v1096 = vsel %vm941, %v852, 0
    %v1099 = vsel %vm941, %v853, 0
    %v1102 = vsel %vm941, %v854, 0
    %v1105 = vsel %vm941, %v855, 0
    %v1108 = vsel %vm941, %v856, 0
    %v1111 = vsel %vm941, %v857, 0
    %v1114 = vsel %vm941, %v858, 0
    %v1117 = vsel %vm941, %v859, 0
    %v1120 = vsel %vm941, %v860, 0
    %v1123 = vsel %vm941, %v861, 0
    %v1126 = vsel %vm941, %v862, 0
    %v1129 = vsel %vm941, %v863, 0
    %v1132 = vsel %vm941, %v864, 0
    %v1135 = vsel %vm941, %v865, 0
    %v1138 = vsel %vm941, %v866, 0
    %v1141 = vsel %vm941, %v867, 0
    %v1144 = vsel %vm941, %v868, 0
    %v1147 = vsel %vm941, %v869, 0
    %v1150 = vsel %vm941, %v870, 0
    %v1153 = vsel %vm941, %v871, 0
    %v1156 = vsel %vm941, %v872, 0
    %v1159 = vsel %vm941, %v873, 0
    %v1162 = vsel %vm941, %v874, 0
    %v1165 = vsel %vm941, %v875, 0
    %v1168 = vsel %vm941, %v876, 0
    %v1171 = vsel %vm941, %v877, 0
    %v1174 = vsel %vm941, %v878, 0
    %v1177 = vsel %vm941, %v879, 0
    %v1180 = vsel %vm941, %v880, 0
    %v1183 = vsel %vm941, %v881, 0
    %v1186 = vsel %vm941, %v882, 0
    %v1189 = vsel %vm941, %v883, 0
    %v1192 = vsel %vm941, %v884, 0
    %v1195 = vsel %vm941, %v885, 0
    %v1198 = vsel %vm941, %v886, 0
    %v1201 = vsel %vm941, %v887, 0
    %v1204 = vsel %vm941, %v888, 0
    %v1207 = vsel %vm941, %v889, 0
    %v1210 = vsel %vm941, %v890, 0
    %v1213 = vsel %vm941, %v891, 0
    %v1216 = vsel %vm941, %v892, 0
    %v1219 = vsel %vm941, %v893, 0
    %v1222 = vsel %vm941, %v894, 0
    %v1225 = vsel %vm941, %v895, 0
    %v1228 = vsel %vm941, %v896, 0
    %v1231 = vsel %vm941, %v897, 0
    %v1234 = vsel %vm941, %v898, 0
    %v1237 = vsel %vm941, %v899, 0
    %v1240 = vsel %vm941, %v900, 0
    %v1243 = vsel %vm941, %v901, 0
    %v1246 = vsel %vm941, %v902, 0
    %v1249 = vsel %vm941, %v903, 0
    %v1252 = vsel %vm941, %v904, 0
    %v1255 = vsel %vm941, %v905, 0
    %v1258 = vsel %vm941, %v906, 0
    %v1261 = vsel %vm941, %v907, 0
    %v1264 = vsel %vm941, %v908, 0
    %v1267 = vsel %vm941, %v909, 0
    %v1270 = vsel %vm941, %v910, 0
    %v1273 = vsel %vm941, %v911, 0
    %v1276 = vsel %vm941, %v912, 0
    %v1279 = vsel %vm941, %v913, 0
    %v1282 = vsel %vm941, %v914, 0
    %v1285 = vsel %vm941, %v915, 0
    %v1288 = vsel %vm941, %v916, 0
    %v1291 = vsel %vm941, %v917, 0
    %v1294 = vsel %vm941, %v918, 0
    %v1297 = vsel %vm941, %v919, 0
    %v1300 = vsel %vm941, %v920, 0
    %v1303 = vsel %vm941, %v921, 0
    %v1306 = vsel %vm941, %v922, 0
    %v1309 = vsel %vm941, %v923, 0
    %v1312 = vsel %vm941, %v924, 0
    %v1315 = vsel %vm941, %v925, 0
    %v1318 = vsel %vm941, %v926, 0
    %v1321 = vsel %vm941, %v927, 0
    %v1324 = vsel %vm941, %v928, 0
    %1326 = vmatprep.subr.bf16.mxu0 0
    %1327 = vmatpush1.bf16.msra.mxu0 %v937
    %1328 = vmatprep.subr.bf16.mxu0 0
    %1329 = vmatpush1.bf16.msra.mxu0 %v938
    %1330 = vmatprep.subr.bf16.mxu0 0
    %1331 = vmatpush1.bf16.msra.mxu0 0
    %1332 = vmatprep.subr.bf16.mxu0 0
    %1333 = vmatpush1.bf16.msra.mxu0 0
    %1334 = vmatprep.subr.bf16.mxu0 0
    %1335 = vmatpush1.bf16.msra.mxu0 0
    %1336 = vmatprep.subr.bf16.mxu0 0
    %1337 = vmatpush1.bf16.msra.mxu0 0
    %1338 = vmatprep.subr.bf16.mxu0 0
    %1339 = vmatpush1.bf16.msra.mxu0 0
    %1340 = vmatprep.subr.bf16.mxu0 0
    %1341 = vmatpush1.bf16.msra.mxu0 0
    %1342 = vmatprep.subr.bf16.mxu0 0
    %1343 = vmatpush1.bf16.msra.mxu0 0
    %1344 = vmatprep.subr.bf16.mxu0 0
    %1345 = vmatpush1.bf16.msra.mxu0 0
    %1346 = vmatprep.subr.bf16.mxu0 0
    %1347 = vmatpush1.bf16.msra.mxu0 0
    %1348 = vmatprep.subr.bf16.mxu0 0
    %1349 = vmatpush1.bf16.msra.mxu0 0
    %1350 = vmatprep.subr.bf16.mxu0 0
    %1351 = vmatpush1.bf16.msra.mxu0 0
    %1352 = vmatprep.subr.bf16.mxu0 0
    %1353 = vmatpush1.bf16.msra.mxu0 0
    %1354 = vmatprep.subr.bf16.mxu0 0
    %1355 = vmatpush1.bf16.msra.mxu0 0
    %1356 = vmatprep.subr.bf16.mxu0 0
    %1357 = vmatpush1.bf16.msra.mxu0 0
    %1358 = vmatprep.mubr.bf16.mxu0 0
    %1359 = vmatmul.mubr.bf16.gmra.mrb[0].mxu0 %v943
    %v1360 = vpop.f32.mrb[0].mxu0
    %v1361 = vadd.f32 %v287, %v1360
    %v1362 = vpop.f32.mrb[0].mxu0
    %v1363 = vpop.f32.mrb[0].mxu0
    %v1364 = vadd.f32 %v287, %v1363
    %v1365 = vpop.f32.mrb[0].mxu0
    %1366 = vmatprep.mubr.bf16.mxu0 0
    %1367 = vmatmul.mubr.bf16.gmra.mrb[0].mxu0 %v946
    %v1368 = vpop.f32.mrb[0].mxu0
    %v1369 = vadd.f32 %v287, %v1368
    %v1370 = vpop.f32.mrb[0].mxu0
    %v1371 = vpop.f32.mrb[0].mxu0
    %v1372 = vadd.f32 %v287, %v1371
    %v1373 = vpop.f32.mrb[0].mxu0
    %1374 = vmatprep.mubr.bf16.mxu0 0
    %1375 = vmatmul.mubr.bf16.gmra.mrb[0].mxu0 %v949
    %v1376 = vpop.f32.mrb[0].mxu0
    %v1377 = vadd.f32 %v287, %v1376
    %v1378 = vpop.f32.mrb[0].mxu0
    %v1379 = vpop.f32.mrb[0].mxu0
    %v1380 = vadd.f32 %v287, %v1379
    %v1381 = vpop.f32.mrb[0].mxu0
    %1382 = vmatprep.mubr.bf16.mxu0 0
    %1383 = vmatmul.mubr.bf16.gmra.mrb[0].mxu0 %v952
    %v1384 = vpop.f32.mrb[0].mxu0
    %v1385 = vadd.f32 %v287, %v1384
    %v1386 = vpop.f32.mrb[0].mxu0
    %v1387 = vpop.f32.mrb[0].mxu0
    %v1388 = vadd.f32 %v287, %v1387
    %v1389 = vpop.f32.mrb[0].mxu0
    %1390 = vmatprep.mubr.bf16.mxu0 0
    %1391 = vmatmul.mubr.bf16.gmra.mrb[0].mxu0 %v955
    %v1392 = vpop.f32.mrb[0].mxu0
    %v1393 = vadd.f32 %v287, %v1392
    %v1394 = vpop.f32.mrb[0].mxu0
    %v1395 = vpop.f32.mrb[0].mxu0
    %v1396 = vadd.f32 %v287, %v1395
    %v1397 = vpop.f32.mrb[0].mxu0
    %1398 = vmatprep.mubr.bf16.mxu0 0
    %1399 = vmatmul.mubr.bf16.gmra.mrb[0].mxu0 %v958
    %v1400 = vpop.f32.mrb[0].mxu0
    %v1401 = vadd.f32 %v287, %v1400
    %v1402 = vpop.f32.mrb[0].mxu0
    %v1403 = vpop.f32.mrb[0].mxu0
    %v1404 = vadd.f32 %v287, %v1403
    %v1405 = vpop.f32.mrb[0].mxu0
    %1406 = vmatprep.mubr.bf16.mxu0 0
    %1407 = vmatmul.mubr.bf16.gmra.mrb[0].mxu0 %v961
    %v1408 = vpop.f32.mrb[0].mxu0
    %v1409 = vadd.f32 %v287, %v1408
    %v1410 = vpop.f32.mrb[0].mxu0
    %v1411 = vpop.f32.mrb[0].mxu0
    %v1412 = vadd.f32 %v287, %v1411
    %v1413 = vpop.f32.mrb[0].mxu0
    %1414 = vmatprep.mubr.bf16.mxu0 0
    %1415 = vmatmul.mubr.bf16.gmra.mrb[0].mxu0 %v964
    %v1416 = vpop.f32.mrb[0].mxu0
    %v1417 = vadd.f32 %v287, %v1416
    %v1418 = vpop.f32.mrb[0].mxu0
    %v1419 = vpop.f32.mrb[0].mxu0
    %v1420 = vadd.f32 %v287, %v1419
    %v1421 = vpop.f32.mrb[0].mxu0
    %1422 = vmatprep.mubr.bf16.mxu0 0
    %1423 = vmatmul.mubr.bf16.gmra.mrb[0].mxu0 %v967
    %v1424 = vpop.f32.mrb[0].mxu0
    %v1425 = vadd.f32 %v287, %v1424
    %v1426 = vpop.f32.mrb[0].mxu0
    %v1427 = vpop.f32.mrb[0].mxu0
    %v1428 = vadd.f32 %v287, %v1427
    %v1429 = vpop.f32.mrb[0].mxu0
    %1430 = vmatprep.mubr.bf16.mxu0 0
    %1431 = vmatmul.mubr.bf16.gmra.mrb[0].mxu0 %v970
    %v1432 = vpop.f32.mrb[0].mxu0
    %v1433 = vadd.f32 %v287, %v1432
    %v1434 = vpop.f32.mrb[0].mxu0
    %v1435 = vpop.f32.mrb[0].mxu0
    %v1436 = vadd.f32 %v287, %v1435
    %v1437 = vpop.f32.mrb[0].mxu0
    %1438 = vmatprep.mubr.bf16.mxu0 0
    %1439 = vmatmul.mubr.bf16.gmra.mrb[0].mxu0 %v973
    %v1440 = vpop.f32.mrb[0].mxu0
    %v1441 = vadd.f32 %v287, %v1440
    %v1442 = vpop.f32.mrb[0].mxu0
    %v1443 = vpop.f32.mrb[0].mxu0
    %v1444 = vadd.f32 %v287, %v1443
    %v1445 = vpop.f32.mrb[0].mxu0
    %1446 = vmatprep.mubr.bf16.mxu0 0
    %1447 = vmatmul.mubr.bf16.gmra.mrb[0].mxu0 %v976
    %v1448 = vpop.f32.mrb[0].mxu0
    %v1449 = vadd.f32 %v287, %v1448
    %v1450 = vpop.f32.mrb[0].mxu0
    %v1451 = vpop.f32.mrb[0].mxu0
    %v1452 = vadd.f32 %v287, %v1451
    %v1453 = vpop.f32.mrb[0].mxu0
    %1454 = vmatprep.mubr.bf16.mxu0 0
    %1455 = vmatmul.mubr.bf16.gmra.mrb[0].mxu0 %v979
    %v1456 = vpop.f32.mrb[0].mxu0
    %v1457 = vadd.f32 %v287, %v1456
    %v1458 = vpop.f32.mrb[0].mxu0
    %v1459 = vpop.f32.mrb[0].mxu0
    %v1460 = vadd.f32 %v287, %v1459
    %v1461 = vpop.f32.mrb[0].mxu0
    %1462 = vmatprep.mubr.bf16.mxu0 0
    %1463 = vmatmul.mubr.bf16.gmra.mrb[0].mxu0 %v982
    %v1464 = vpop.f32.mrb[0].mxu0
    %v1465 = vadd.f32 %v287, %v1464
    %v1466 = vpop.f32.mrb[0].mxu0
    %v1467 = vpop.f32.mrb[0].mxu0
    %v1468 = vadd.f32 %v287, %v1467
    %v1469 = vpop.f32.mrb[0].mxu0
    %1470 = vmatprep.mubr.bf16.mxu0 0
    %1471 = vmatmul.mubr.bf16.gmra.mrb[0].mxu0 %v985
    %v1472 = vpop.f32.mrb[0].mxu0
    %v1473 = vadd.f32 %v287, %v1472
    %v1474 = vpop.f32.mrb[0].mxu0
    %v1475 = vpop.f32.mrb[0].mxu0
    %v1476 = vadd.f32 %v287, %v1475
    %v1477 = vpop.f32.mrb[0].mxu0
    %1478 = vmatprep.mubr.bf16.mxu0 0
    %1479 = vmatmul.mubr.bf16.gmra.mrb[0].mxu0 %v988
    %v1480 = vpop.f32.mrb[0].mxu0
    %v1481 = vadd.f32 %v287, %v1480
    %v1482 = vpop.f32.mrb[0].mxu0
    %v1483 = vpop.f32.mrb[0].mxu0
    %v1484 = vadd.f32 %v287, %v1483
    %v1485 = vpop.f32.mrb[0].mxu0
    %1486 = vmatprep.mubr.bf16.mxu0 0
    %1487 = vmatmul.mubr.bf16.gmra.mrb[0].mxu0 %v991
    %v1488 = vpop.f32.mrb[0].mxu0
    %v1489 = vadd.f32 %v287, %v1488
    %v1490 = vpop.f32.mrb[0].mxu0
    %v1491 = vpop.f32.mrb[0].mxu0
    %v1492 = vadd.f32 %v287, %v1491
    %v1493 = vpop.f32.mrb[0].mxu0
    %1494 = vmatprep.mubr.bf16.mxu0 0
    %1495 = vmatmul.mubr.bf16.gmra.mrb[0].mxu0 %v994
    %v1496 = vpop.f32.mrb[0].mxu0
    %v1497 = vadd.f32 %v287, %v1496
    %v1498 = vpop.f32.mrb[0].mxu0
    %v1499 = vpop.f32.mrb[0].mxu0
    %v1500 = vadd.f32 %v287, %v1499
    %v1501 = vpop.f32.mrb[0].mxu0
    %1502 = vmatprep.mubr.bf16.mxu0 0
    %1503 = vmatmul.mubr.bf16.gmra.mrb[0].mxu0 %v997
    %v1504 = vpop.f32.mrb[0].mxu0
    %v1505 = vadd.f32 %v287, %v1504
    %v1506 = vpop.f32.mrb[0].mxu0
    %v1507 = vpop.f32.mrb[0].mxu0
    %v1508 = vadd.f32 %v287, %v1507
    %v1509 = vpop.f32.mrb[0].mxu0
    %1510 = vmatprep.mubr.bf16.mxu0 0
    %1511 = vmatmul.mubr.bf16.gmra.mrb[0].mxu0 %v1000
    %v1512 = vpop.f32.mrb[0].mxu0
    %v1513 = vadd.f32 %v287, %v1512
    %v1514 = vpop.f32.mrb[0].mxu0
    %v1515 = vpop.f32.mrb[0].mxu0
    %v1516 = vadd.f32 %v287, %v1515
    %v1517 = vpop.f32.mrb[0].mxu0
    %1518 = vmatprep.mubr.bf16.mxu0 0
    %1519 = vmatmul.mubr.bf16.gmra.mrb[0].mxu0 %v1003
    %v1520 = vpop.f32.mrb[0].mxu0
    %v1521 = vadd.f32 %v287, %v1520
    %v1522 = vpop.f32.mrb[0].mxu0
    %v1523 = vpop.f32.mrb[0].mxu0
    %v1524 = vadd.f32 %v287, %v1523
    %v1525 = vpop.f32.mrb[0].mxu0
    %1526 = vmatprep.mubr.bf16.mxu0 0
    %1527 = vmatmul.mubr.bf16.gmra.mrb[0].mxu0 %v1006
    %v1528 = vpop.f32.mrb[0].mxu0
    %v1529 = vadd.f32 %v287, %v1528
    %v1530 = vpop.f32.mrb[0].mxu0
    %v1531 = vpop.f32.mrb[0].mxu0
    %v1532 = vadd.f32 %v287, %v1531
    %v1533 = vpop.f32.mrb[0].mxu0
    %1534 = vmatprep.mubr.bf16.mxu0 0
    %1535 = vmatmul.mubr.bf16.gmra.mrb[0].mxu0 %v1009
    %v1536 = vpop.f32.mrb[0].mxu0
    %v1537 = vadd.f32 %v287, %v1536
    %v1538 = vpop.f32.mrb[0].mxu0
    %v1539 = vpop.f32.mrb[0].mxu0
    %v1540 = vadd.f32 %v287, %v1539
    %v1541 = vpop.f32.mrb[0].mxu0
    %1542 = vmatprep.mubr.bf16.mxu0 0
    %1543 = vmatmul.mubr.bf16.gmra.mrb[0].mxu0 %v1012
    %v1544 = vpop.f32.mrb[0].mxu0
    %v1545 = vadd.f32 %v287, %v1544
    %v1546 = vpop.f32.mrb[0].mxu0
    %v1547 = vpop.f32.mrb[0].mxu0
    %v1548 = vadd.f32 %v287, %v1547
    %v1549 = vpop.f32.mrb[0].mxu0
    %1550 = vmatprep.mubr.bf16.mxu0 0
    %1551 = vmatmul.mubr.bf16.gmra.mrb[0].mxu0 %v1015
    %v1552 = vpop.f32.mrb[0].mxu0
    %v1553 = vadd.f32 %v287, %v1552
    %v1554 = vpop.f32.mrb[0].mxu0
    %v1555 = vpop.f32.mrb[0].mxu0
    %v1556 = vadd.f32 %v287, %v1555
    %v1557 = vpop.f32.mrb[0].mxu0
    %1558 = vmatprep.mubr.bf16.mxu0 0
    %1559 = vmatmul.mubr.bf16.gmra.mrb[0].mxu0 %v1018
    %v1560 = vpop.f32.mrb[0].mxu0
    %v1561 = vadd.f32 %v287, %v1560
    %v1562 = vpop.f32.mrb[0].mxu0
    %v1563 = vpop.f32.mrb[0].mxu0
    %v1564 = vadd.f32 %v287, %v1563
    %v1565 = vpop.f32.mrb[0].mxu0
    %1566 = vmatprep.mubr.bf16.mxu0 0
    %1567 = vmatmul.mubr.bf16.gmra.mrb[0].mxu0 %v1021
    %v1568 = vpop.f32.mrb[0].mxu0
    %v1569 = vadd.f32 %v287, %v1568
    %v1570 = vpop.f32.mrb[0].mxu0
    %v1571 = vpop.f32.mrb[0].mxu0
    %v1572 = vadd.f32 %v287, %v1571
    %v1573 = vpop.f32.mrb[0].mxu0
    %1574 = vmatprep.mubr.bf16.mxu0 0
    %1575 = vmatmul.mubr.bf16.gmra.mrb[0].mxu0 %v1024
    %v1576 = vpop.f32.mrb[0].mxu0
    %v1577 = vadd.f32 %v287, %v1576
    %v1578 = vpop.f32.mrb[0].mxu0
    %v1579 = vpop.f32.mrb[0].mxu0
    %v1580 = vadd.f32 %v287, %v1579
    %v1581 = vpop.f32.mrb[0].mxu0
    %1582 = vmatprep.mubr.bf16.mxu0 0
    %1583 = vmatmul.mubr.bf16.gmra.mrb[0].mxu0 %v1027
    %v1584 = vpop.f32.mrb[0].mxu0
    %v1585 = vadd.f32 %v287, %v1584
    %v1586 = vpop.f32.mrb[0].mxu0
    %v1587 = vpop.f32.mrb[0].mxu0
    %v1588 = vadd.f32 %v287, %v1587
    %v1589 = vpop.f32.mrb[0].mxu0
    %1590 = vmatprep.mubr.bf16.mxu0 0
    %1591 = vmatmul.mubr.bf16.gmra.mrb[0].mxu0 %v1030
    %v1592 = vpop.f32.mrb[0].mxu0
    %v1593 = vadd.f32 %v287, %v1592
    %v1594 = vpop.f32.mrb[0].mxu0
    %v1595 = vpop.f32.mrb[0].mxu0
    %v1596 = vadd.f32 %v287, %v1595
    %v1597 = vpop.f32.mrb[0].mxu0
    %1598 = vmatprep.mubr.bf16.mxu0 0
    %1599 = vmatmul.mubr.bf16.gmra.mrb[0].mxu0 %v1033
    %v1600 = vpop.f32.mrb[0].mxu0
    %v1601 = vadd.f32 %v287, %v1600
    %v1602 = vpop.f32.mrb[0].mxu0
    %v1603 = vpop.f32.mrb[0].mxu0
    %v1604 = vadd.f32 %v287, %v1603
    %v1605 = vpop.f32.mrb[0].mxu0
    %1606 = vmatprep.mubr.bf16.mxu0 0
    %1607 = vmatmul.mubr.bf16.gmra.mrb[0].mxu0 %v1036
    %v1608 = vpop.f32.mrb[0].mxu0
    %v1609 = vadd.f32 %v287, %v1608
    %v1610 = vpop.f32.mrb[0].mxu0
    %v1611 = vpop.f32.mrb[0].mxu0
    %v1612 = vadd.f32 %v287, %v1611
    %v1613 = vpop.f32.mrb[0].mxu0
    %1614 = vmatprep.mubr.bf16.mxu0 0
    %1615 = vmatmul.mubr.bf16.gmra.mrb[0].mxu0 %v1039
    %v1616 = vpop.f32.mrb[0].mxu0
    %v1617 = vadd.f32 %v287, %v1616
    %v1618 = vpop.f32.mrb[0].mxu0
    %v1619 = vpop.f32.mrb[0].mxu0
    %v1620 = vadd.f32 %v287, %v1619
    %v1621 = vpop.f32.mrb[0].mxu0
    %1622 = vmatprep.mubr.bf16.mxu0 0
    %1623 = vmatmul.mubr.bf16.gmra.mrb[0].mxu0 %v1042
    %v1624 = vpop.f32.mrb[0].mxu0
    %v1625 = vadd.f32 %v287, %v1624
    %v1626 = vpop.f32.mrb[0].mxu0
    %v1627 = vpop.f32.mrb[0].mxu0
    %v1628 = vadd.f32 %v287, %v1627
    %v1629 = vpop.f32.mrb[0].mxu0
    %1630 = vmatprep.mubr.bf16.mxu0 0
    %1631 = vmatmul.mubr.bf16.gmra.mrb[0].mxu0 %v1045
    %v1632 = vpop.f32.mrb[0].mxu0
    %v1633 = vadd.f32 %v287, %v1632
    %v1634 = vpop.f32.mrb[0].mxu0
    %v1635 = vpop.f32.mrb[0].mxu0
    %v1636 = vadd.f32 %v287, %v1635
    %v1637 = vpop.f32.mrb[0].mxu0
    %1638 = vmatprep.mubr.bf16.mxu0 0
    %1639 = vmatmul.mubr.bf16.gmra.mrb[0].mxu0 %v1048
    %v1640 = vpop.f32.mrb[0].mxu0
    %v1641 = vadd.f32 %v287, %v1640
    %v1642 = vpop.f32.mrb[0].mxu0
    %v1643 = vpop.f32.mrb[0].mxu0
    %v1644 = vadd.f32 %v287, %v1643
    %v1645 = vpop.f32.mrb[0].mxu0
    %1646 = vmatprep.mubr.bf16.mxu0 0
    %1647 = vmatmul.mubr.bf16.gmra.mrb[0].mxu0 %v1051
    %v1648 = vpop.f32.mrb[0].mxu0
    %v1649 = vadd.f32 %v287, %v1648
    %v1650 = vpop.f32.mrb[0].mxu0
    %v1651 = vpop.f32.mrb[0].mxu0
    %v1652 = vadd.f32 %v287, %v1651
    %v1653 = vpop.f32.mrb[0].mxu0
    %1654 = vmatprep.mubr.bf16.mxu0 0
    %1655 = vmatmul.mubr.bf16.gmra.mrb[0].mxu0 %v1054
    %v1656 = vpop.f32.mrb[0].mxu0
    %v1657 = vadd.f32 %v287, %v1656
    %v1658 = vpop.f32.mrb[0].mxu0
    %v1659 = vpop.f32.mrb[0].mxu0
    %v1660 = vadd.f32 %v287, %v1659
    %v1661 = vpop.f32.mrb[0].mxu0
    %1662 = vmatprep.mubr.bf16.mxu0 0
    %1663 = vmatmul.mubr.bf16.gmra.mrb[0].mxu0 %v1057
    %v1664 = vpop.f32.mrb[0].mxu0
    %v1665 = vadd.f32 %v287, %v1664
    %v1666 = vpop.f32.mrb[0].mxu0
    %v1667 = vpop.f32.mrb[0].mxu0
    %v1668 = vadd.f32 %v287, %v1667
    %v1669 = vpop.f32.mrb[0].mxu0
    %1670 = vmatprep.mubr.bf16.mxu0 0
    %1671 = vmatmul.mubr.bf16.gmra.mrb[0].mxu0 %v1060
    %v1672 = vpop.f32.mrb[0].mxu0
    %v1673 = vadd.f32 %v287, %v1672
    %v1674 = vpop.f32.mrb[0].mxu0
    %v1675 = vpop.f32.mrb[0].mxu0
    %v1676 = vadd.f32 %v287, %v1675
    %v1677 = vpop.f32.mrb[0].mxu0
    %1678 = vmatprep.mubr.bf16.mxu0 0
    %1679 = vmatmul.mubr.bf16.gmra.mrb[0].mxu0 %v1063
    %v1680 = vpop.f32.mrb[0].mxu0
    %v1681 = vadd.f32 %v287, %v1680
    %v1682 = vpop.f32.mrb[0].mxu0
    %v1683 = vpop.f32.mrb[0].mxu0
    %v1684 = vadd.f32 %v287, %v1683
    %v1685 = vpop.f32.mrb[0].mxu0
    %1686 = vmatprep.mubr.bf16.mxu0 0
    %1687 = vmatmul.mubr.bf16.gmra.mrb[0].mxu0 %v1066
    %v1688 = vpop.f32.mrb[0].mxu0
    %v1689 = vadd.f32 %v287, %v1688
    %v1690 = vpop.f32.mrb[0].mxu0
    %v1691 = vpop.f32.mrb[0].mxu0
    %v1692 = vadd.f32 %v287, %v1691
    %v1693 = vpop.f32.mrb[0].mxu0
    %1694 = vmatprep.mubr.bf16.mxu0 0
    %1695 = vmatmul.mubr.bf16.gmra.mrb[0].mxu0 %v1069
    %v1696 = vpop.f32.mrb[0].mxu0
    %v1697 = vadd.f32 %v287, %v1696
    %v1698 = vpop.f32.mrb[0].mxu0
    %v1699 = vpop.f32.mrb[0].mxu0
    %v1700 = vadd.f32 %v287, %v1699
    %v1701 = vpop.f32.mrb[0].mxu0
    %1702 = vmatprep.mubr.bf16.mxu0 0
    %1703 = vmatmul.mubr.bf16.gmra.mrb[0].mxu0 %v1072
    %v1704 = vpop.f32.mrb[0].mxu0
    %v1705 = vadd.f32 %v287, %v1704
    %v1706 = vpop.f32.mrb[0].mxu0
    %v1707 = vpop.f32.mrb[0].mxu0
    %v1708 = vadd.f32 %v287, %v1707
    %v1709 = vpop.f32.mrb[0].mxu0
    %1710 = vmatprep.mubr.bf16.mxu0 0
    %1711 = vmatmul.mubr.bf16.gmra.mrb[0].mxu0 %v1075
    %v1712 = vpop.f32.mrb[0].mxu0
    %v1713 = vadd.f32 %v287, %v1712
    %v1714 = vpop.f32.mrb[0].mxu0
    %v1715 = vpop.f32.mrb[0].mxu0
    %v1716 = vadd.f32 %v287, %v1715
    %v1717 = vpop.f32.mrb[0].mxu0
    %1718 = vmatprep.mubr.bf16.mxu0 0
    %1719 = vmatmul.mubr.bf16.gmra.mrb[0].mxu0 %v1078
    %v1720 = vpop.f32.mrb[0].mxu0
    %v1721 = vadd.f32 %v287, %v1720
    %v1722 = vpop.f32.mrb[0].mxu0
    %v1723 = vpop.f32.mrb[0].mxu0
    %v1724 = vadd.f32 %v287, %v1723
    %v1725 = vpop.f32.mrb[0].mxu0
    %1726 = vmatprep.mubr.bf16.mxu0 0
    %1727 = vmatmul.mubr.bf16.gmra.mrb[0].mxu0 %v1081
    %v1728 = vpop.f32.mrb[0].mxu0
    %v1729 = vadd.f32 %v287, %v1728
    %v1730 = vpop.f32.mrb[0].mxu0
    %v1731 = vpop.f32.mrb[0].mxu0
    %v1732 = vadd.f32 %v287, %v1731
    %v1733 = vpop.f32.mrb[0].mxu0
    %1734 = vmatprep.mubr.bf16.mxu0 0
    %1735 = vmatmul.mubr.bf16.gmra.mrb[0].mxu0 %v1084
    %v1736 = vpop.f32.mrb[0].mxu0
    %v1737 = vadd.f32 %v287, %v1736
    %v1738 = vpop.f32.mrb[0].mxu0
    %v1739 = vpop.f32.mrb[0].mxu0
    %v1740 = vadd.f32 %v287, %v1739
    %v1741 = vpop.f32.mrb[0].mxu0
    %1742 = vmatprep.mubr.bf16.mxu0 0
    %1743 = vmatmul.mubr.bf16.gmra.mrb[0].mxu0 %v1087
    %v1744 = vpop.f32.mrb[0].mxu0
    %v1745 = vadd.f32 %v287, %v1744
    %v1746 = vpop.f32.mrb[0].mxu0
    %v1747 = vpop.f32.mrb[0].mxu0
    %v1748 = vadd.f32 %v287, %v1747
    %v1749 = vpop.f32.mrb[0].mxu0
    %1750 = vmatprep.mubr.bf16.mxu0 0
    %1751 = vmatmul.mubr.bf16.gmra.mrb[0].mxu0 %v1090
    %v1752 = vpop.f32.mrb[0].mxu0
    %v1753 = vadd.f32 %v287, %v1752
    %v1754 = vpop.f32.mrb[0].mxu0
    %v1755 = vpop.f32.mrb[0].mxu0
    %v1756 = vadd.f32 %v287, %v1755
    %v1757 = vpop.f32.mrb[0].mxu0
    %1758 = vmatprep.mubr.bf16.mxu0 0
    %1759 = vmatmul.mubr.bf16.gmra.mrb[0].mxu0 %v1093
    %v1760 = vpop.f32.mrb[0].mxu0
    %v1761 = vadd.f32 %v287, %v1760
    %v1762 = vpop.f32.mrb[0].mxu0
    %v1763 = vpop.f32.mrb[0].mxu0
    %v1764 = vadd.f32 %v287, %v1763
    %v1765 = vpop.f32.mrb[0].mxu0
    %1766 = vmatprep.mubr.bf16.mxu0 0
    %1767 = vmatmul.mubr.bf16.gmra.mrb[0].mxu0 %v1096
    %v1768 = vpop.f32.mrb[0].mxu0
    %v1769 = vadd.f32 %v287, %v1768
    %v1770 = vpop.f32.mrb[0].mxu0
    %v1771 = vpop.f32.mrb[0].mxu0
    %v1772 = vadd.f32 %v287, %v1771
    %v1773 = vpop.f32.mrb[0].mxu0
    %1774 = vmatprep.mubr.bf16.mxu0 0
    %1775 = vmatmul.mubr.bf16.gmra.mrb[0].mxu0 %v1099
    %v1776 = vpop.f32.mrb[0].mxu0
    %v1777 = vadd.f32 %v287, %v1776
    %v1778 = vpop.f32.mrb[0].mxu0
    %v1779 = vpop.f32.mrb[0].mxu0
    %v1780 = vadd.f32 %v287, %v1779
    %v1781 = vpop.f32.mrb[0].mxu0
    %1782 = vmatprep.mubr.bf16.mxu0 0
    %1783 = vmatmul.mubr.bf16.gmra.mrb[0].mxu0 %v1102
    %v1784 = vpop.f32.mrb[0].mxu0
    %v1785 = vadd.f32 %v287, %v1784
    %v1786 = vpop.f32.mrb[0].mxu0
    %v1787 = vpop.f32.mrb[0].mxu0
    %v1788 = vadd.f32 %v287, %v1787
    %v1789 = vpop.f32.mrb[0].mxu0
    %1790 = vmatprep.mubr.bf16.mxu0 0
    %1791 = vmatmul.mubr.bf16.gmra.mrb[0].mxu0 %v1105
    %v1792 = vpop.f32.mrb[0].mxu0
    %v1793 = vadd.f32 %v287, %v1792
    %v1794 = vpop.f32.mrb[0].mxu0
    %v1795 = vpop.f32.mrb[0].mxu0
    %v1796 = vadd.f32 %v287, %v1795
    %v1797 = vpop.f32.mrb[0].mxu0
    %1798 = vmatprep.mubr.bf16.mxu0 0
    %1799 = vmatmul.mubr.bf16.gmra.mrb[0].mxu0 %v1108
    %v1800 = vpop.f32.mrb[0].mxu0
    %v1801 = vadd.f32 %v287, %v1800
    %v1802 = vpop.f32.mrb[0].mxu0
    %v1803 = vpop.f32.mrb[0].mxu0
    %v1804 = vadd.f32 %v287, %v1803
    %v1805 = vpop.f32.mrb[0].mxu0
    %1806 = vmatprep.mubr.bf16.mxu0 0
    %1807 = vmatmul.mubr.bf16.gmra.mrb[0].mxu0 %v1111
    %v1808 = vpop.f32.mrb[0].mxu0
    %v1809 = vadd.f32 %v287, %v1808
    %v1810 = vpop.f32.mrb[0].mxu0
    %v1811 = vpop.f32.mrb[0].mxu0
    %v1812 = vadd.f32 %v287, %v1811
    %v1813 = vpop.f32.mrb[0].mxu0
    %1814 = vmatprep.mubr.bf16.mxu0 0
    %1815 = vmatmul.mubr.bf16.gmra.mrb[0].mxu0 %v1114
    %v1816 = vpop.f32.mrb[0].mxu0
    %v1817 = vadd.f32 %v287, %v1816
    %v1818 = vpop.f32.mrb[0].mxu0
    %v1819 = vpop.f32.mrb[0].mxu0
    %v1820 = vadd.f32 %v287, %v1819
    %v1821 = vpop.f32.mrb[0].mxu0
    %1822 = vmatprep.mubr.bf16.mxu0 0
    %1823 = vmatmul.mubr.bf16.gmra.mrb[0].mxu0 %v1117
    %v1824 = vpop.f32.mrb[0].mxu0
    %v1825 = vadd.f32 %v287, %v1824
    %v1826 = vpop.f32.mrb[0].mxu0
    %v1827 = vpop.f32.mrb[0].mxu0
    %v1828 = vadd.f32 %v287, %v1827
    %v1829 = vpop.f32.mrb[0].mxu0
    %1830 = vmatprep.mubr.bf16.mxu0 0
    %1831 = vmatmul.mubr.bf16.gmra.mrb[0].mxu0 %v1120
    %v1832 = vpop.f32.mrb[0].mxu0
    %v1833 = vadd.f32 %v287, %v1832
    %v1834 = vpop.f32.mrb[0].mxu0
    %v1835 = vpop.f32.mrb[0].mxu0
    %v1836 = vadd.f32 %v287, %v1835
    %v1837 = vpop.f32.mrb[0].mxu0
    %1838 = vmatprep.mubr.bf16.mxu0 0
    %1839 = vmatmul.mubr.bf16.gmra.mrb[0].mxu0 %v1123
    %v1840 = vpop.f32.mrb[0].mxu0
    %v1841 = vadd.f32 %v287, %v1840
    %v1842 = vpop.f32.mrb[0].mxu0
    %v1843 = vpop.f32.mrb[0].mxu0
    %v1844 = vadd.f32 %v287, %v1843
    %v1845 = vpop.f32.mrb[0].mxu0
    %1846 = vmatprep.mubr.bf16.mxu0 0
    %1847 = vmatmul.mubr.bf16.gmra.mrb[0].mxu0 %v1126
    %v1848 = vpop.f32.mrb[0].mxu0
    %v1849 = vadd.f32 %v287, %v1848
    %v1850 = vpop.f32.mrb[0].mxu0
    %v1851 = vpop.f32.mrb[0].mxu0
    %v1852 = vadd.f32 %v287, %v1851
    %v1853 = vpop.f32.mrb[0].mxu0
    %1854 = vmatprep.mubr.bf16.mxu0 0
    %1855 = vmatmul.mubr.bf16.gmra.mrb[0].mxu0 %v1129
    %v1856 = vpop.f32.mrb[0].mxu0
    %v1857 = vadd.f32 %v287, %v1856
    %v1858 = vpop.f32.mrb[0].mxu0
    %v1859 = vpop.f32.mrb[0].mxu0
    %v1860 = vadd.f32 %v287, %v1859
    %v1861 = vpop.f32.mrb[0].mxu0
    %1862 = vmatprep.mubr.bf16.mxu0 0
    %1863 = vmatmul.mubr.bf16.gmra.mrb[0].mxu0 %v1132
    %v1864 = vpop.f32.mrb[0].mxu0
    %v1865 = vadd.f32 %v287, %v1864
    %v1866 = vpop.f32.mrb[0].mxu0
    %v1867 = vpop.f32.mrb[0].mxu0
    %v1868 = vadd.f32 %v287, %v1867
    %v1869 = vpop.f32.mrb[0].mxu0
    %1870 = vmatprep.mubr.bf16.mxu0 0
    %1871 = vmatmul.mubr.bf16.gmra.mrb[0].mxu0 %v1135
    %v1872 = vpop.f32.mrb[0].mxu0
    %v1873 = vadd.f32 %v287, %v1872
    %v1874 = vpop.f32.mrb[0].mxu0
    %v1875 = vpop.f32.mrb[0].mxu0
    %v1876 = vadd.f32 %v287, %v1875
    %v1877 = vpop.f32.mrb[0].mxu0
    %1878 = vmatprep.mubr.bf16.mxu0 0
    %1879 = vmatmul.mubr.bf16.gmra.mrb[0].mxu0 %v1138
    %v1880 = vpop.f32.mrb[0].mxu0
    %v1881 = vadd.f32 %v287, %v1880
    %v1882 = vpop.f32.mrb[0].mxu0
    %v1883 = vpop.f32.mrb[0].mxu0
    %v1884 = vadd.f32 %v287, %v1883
    %v1885 = vpop.f32.mrb[0].mxu0
    %1886 = vmatprep.mubr.bf16.mxu0 0
    %1887 = vmatmul.mubr.bf16.gmra.mrb[0].mxu0 %v1141
    %v1888 = vpop.f32.mrb[0].mxu0
    %v1889 = vadd.f32 %v287, %v1888
    %v1890 = vpop.f32.mrb[0].mxu0
    %v1891 = vpop.f32.mrb[0].mxu0
    %v1892 = vadd.f32 %v287, %v1891
    %v1893 = vpop.f32.mrb[0].mxu0
    %1894 = vmatprep.mubr.bf16.mxu0 0
    %1895 = vmatmul.mubr.bf16.gmra.mrb[0].mxu0 %v1144
    %v1896 = vpop.f32.mrb[0].mxu0
    %v1897 = vadd.f32 %v287, %v1896
    %v1898 = vpop.f32.mrb[0].mxu0
    %v1899 = vpop.f32.mrb[0].mxu0
    %v1900 = vadd.f32 %v287, %v1899
    %v1901 = vpop.f32.mrb[0].mxu0
    %1902 = vmatprep.mubr.bf16.mxu0 0
    %1903 = vmatmul.mubr.bf16.gmra.mrb[0].mxu0 %v1147
    %v1904 = vpop.f32.mrb[0].mxu0
    %v1905 = vadd.f32 %v287, %v1904
    %v1906 = vpop.f32.mrb[0].mxu0
    %v1907 = vpop.f32.mrb[0].mxu0
    %v1908 = vadd.f32 %v287, %v1907
    %v1909 = vpop.f32.mrb[0].mxu0
    %1910 = vmatprep.mubr.bf16.mxu0 0
    %1911 = vmatmul.mubr.bf16.gmra.mrb[0].mxu0 %v1150
    %v1912 = vpop.f32.mrb[0].mxu0
    %v1913 = vadd.f32 %v287, %v1912
    %v1914 = vpop.f32.mrb[0].mxu0
    %v1915 = vpop.f32.mrb[0].mxu0
    %v1916 = vadd.f32 %v287, %v1915
    %v1917 = vpop.f32.mrb[0].mxu0
    %1918 = vmatprep.mubr.bf16.mxu0 0
    %1919 = vmatmul.mubr.bf16.gmra.mrb[0].mxu0 %v1153
    %v1920 = vpop.f32.mrb[0].mxu0
    %v1921 = vadd.f32 %v287, %v1920
    %v1922 = vpop.f32.mrb[0].mxu0
    %v1923 = vpop.f32.mrb[0].mxu0
    %v1924 = vadd.f32 %v287, %v1923
    %v1925 = vpop.f32.mrb[0].mxu0
    %1926 = vmatprep.mubr.bf16.mxu0 0
    %1927 = vmatmul.mubr.bf16.gmra.mrb[0].mxu0 %v1156
    %v1928 = vpop.f32.mrb[0].mxu0
    %v1929 = vadd.f32 %v287, %v1928
    %v1930 = vpop.f32.mrb[0].mxu0
    %v1931 = vpop.f32.mrb[0].mxu0
    %v1932 = vadd.f32 %v287, %v1931
    %v1933 = vpop.f32.mrb[0].mxu0
    %1934 = vmatprep.mubr.bf16.mxu0 0
    %1935 = vmatmul.mubr.bf16.gmra.mrb[0].mxu0 %v1159
    %v1936 = vpop.f32.mrb[0].mxu0
    %v1937 = vadd.f32 %v287, %v1936
    %v1938 = vpop.f32.mrb[0].mxu0
    %v1939 = vpop.f32.mrb[0].mxu0
    %v1940 = vadd.f32 %v287, %v1939
    %v1941 = vpop.f32.mrb[0].mxu0
    %1942 = vmatprep.mubr.bf16.mxu0 0
    %1943 = vmatmul.mubr.bf16.gmra.mrb[0].mxu0 %v1162
    %v1944 = vpop.f32.mrb[0].mxu0
    %v1945 = vadd.f32 %v287, %v1944
    %v1946 = vpop.f32.mrb[0].mxu0
    %v1947 = vpop.f32.mrb[0].mxu0
    %v1948 = vadd.f32 %v287, %v1947
    %v1949 = vpop.f32.mrb[0].mxu0
    %1950 = vmatprep.mubr.bf16.mxu0 0
    %1951 = vmatmul.mubr.bf16.gmra.mrb[0].mxu0 %v1165
    %v1952 = vpop.f32.mrb[0].mxu0
    %v1953 = vadd.f32 %v287, %v1952
    %v1954 = vpop.f32.mrb[0].mxu0
    %v1955 = vpop.f32.mrb[0].mxu0
    %v1956 = vadd.f32 %v287, %v1955
    %v1957 = vpop.f32.mrb[0].mxu0
    %1958 = vmatprep.mubr.bf16.mxu0 0
    %1959 = vmatmul.mubr.bf16.gmra.mrb[0].mxu0 %v1168
    %v1960 = vpop.f32.mrb[0].mxu0
    %v1961 = vadd.f32 %v287, %v1960
    %v1962 = vpop.f32.mrb[0].mxu0
    %v1963 = vpop.f32.mrb[0].mxu0
    %v1964 = vadd.f32 %v287, %v1963
    %v1965 = vpop.f32.mrb[0].mxu0
    %1966 = vmatprep.mubr.bf16.mxu0 0
    %1967 = vmatmul.mubr.bf16.gmra.mrb[0].mxu0 %v1171
    %v1968 = vpop.f32.mrb[0].mxu0
    %v1969 = vadd.f32 %v287, %v1968
    %v1970 = vpop.f32.mrb[0].mxu0
    %v1971 = vpop.f32.mrb[0].mxu0
    %v1972 = vadd.f32 %v287, %v1971
    %v1973 = vpop.f32.mrb[0].mxu0
    %1974 = vmatprep.mubr.bf16.mxu0 0
    %1975 = vmatmul.mubr.bf16.gmra.mrb[0].mxu0 %v1174
    %v1976 = vpop.f32.mrb[0].mxu0
    %v1977 = vadd.f32 %v287, %v1976
    %v1978 = vpop.f32.mrb[0].mxu0
    %v1979 = vpop.f32.mrb[0].mxu0
    %v1980 = vadd.f32 %v287, %v1979
    %v1981 = vpop.f32.mrb[0].mxu0
    %1982 = vmatprep.mubr.bf16.mxu0 0
    %1983 = vmatmul.mubr.bf16.gmra.mrb[0].mxu0 %v1177
    %v1984 = vpop.f32.mrb[0].mxu0
    %v1985 = vadd.f32 %v287, %v1984
    %v1986 = vpop.f32.mrb[0].mxu0
    %v1987 = vpop.f32.mrb[0].mxu0
    %v1988 = vadd.f32 %v287, %v1987
    %v1989 = vpop.f32.mrb[0].mxu0
    %1990 = vmatprep.mubr.bf16.mxu0 0
    %1991 = vmatmul.mubr.bf16.gmra.mrb[0].mxu0 %v1180
    %v1992 = vpop.f32.mrb[0].mxu0
    %v1993 = vadd.f32 %v287, %v1992
    %v1994 = vpop.f32.mrb[0].mxu0
    %v1995 = vpop.f32.mrb[0].mxu0
    %v1996 = vadd.f32 %v287, %v1995
    %v1997 = vpop.f32.mrb[0].mxu0
    %1998 = vmatprep.mubr.bf16.mxu0 0
    %1999 = vmatmul.mubr.bf16.gmra.mrb[0].mxu0 %v1183
    %v2000 = vpop.f32.mrb[0].mxu0
    %v2001 = vadd.f32 %v287, %v2000
    %v2002 = vpop.f32.mrb[0].mxu0
    %v2003 = vpop.f32.mrb[0].mxu0
    %v2004 = vadd.f32 %v287, %v2003
    %v2005 = vpop.f32.mrb[0].mxu0
    %2006 = vmatprep.mubr.bf16.mxu0 0
    %2007 = vmatmul.mubr.bf16.gmra.mrb[0].mxu0 %v1186
    %v2008 = vpop.f32.mrb[0].mxu0
    %v2009 = vadd.f32 %v287, %v2008
    %v2010 = vpop.f32.mrb[0].mxu0
    %v2011 = vpop.f32.mrb[0].mxu0
    %v2012 = vadd.f32 %v287, %v2011
    %v2013 = vpop.f32.mrb[0].mxu0
    %2014 = vmatprep.mubr.bf16.mxu0 0
    %2015 = vmatmul.mubr.bf16.gmra.mrb[0].mxu0 %v1189
    %v2016 = vpop.f32.mrb[0].mxu0
    %v2017 = vadd.f32 %v287, %v2016
    %v2018 = vpop.f32.mrb[0].mxu0
    %v2019 = vpop.f32.mrb[0].mxu0
    %v2020 = vadd.f32 %v287, %v2019
    %v2021 = vpop.f32.mrb[0].mxu0
    %2022 = vmatprep.mubr.bf16.mxu0 0
    %2023 = vmatmul.mubr.bf16.gmra.mrb[0].mxu0 %v1192
    %v2024 = vpop.f32.mrb[0].mxu0
    %v2025 = vadd.f32 %v287, %v2024
    %v2026 = vpop.f32.mrb[0].mxu0
    %v2027 = vpop.f32.mrb[0].mxu0
    %v2028 = vadd.f32 %v287, %v2027
    %v2029 = vpop.f32.mrb[0].mxu0
    %2030 = vmatprep.mubr.bf16.mxu0 0
    %2031 = vmatmul.mubr.bf16.gmra.mrb[0].mxu0 %v1195
    %v2032 = vpop.f32.mrb[0].mxu0
    %v2033 = vadd.f32 %v287, %v2032
    %v2034 = vpop.f32.mrb[0].mxu0
    %v2035 = vpop.f32.mrb[0].mxu0
    %v2036 = vadd.f32 %v287, %v2035
    %v2037 = vpop.f32.mrb[0].mxu0
    %2038 = vmatprep.mubr.bf16.mxu0 0
    %2039 = vmatmul.mubr.bf16.gmra.mrb[0].mxu0 %v1198
    %v2040 = vpop.f32.mrb[0].mxu0
    %v2041 = vadd.f32 %v287, %v2040
    %v2042 = vpop.f32.mrb[0].mxu0
    %v2043 = vpop.f32.mrb[0].mxu0
    %v2044 = vadd.f32 %v287, %v2043
    %v2045 = vpop.f32.mrb[0].mxu0
    %2046 = vmatprep.mubr.bf16.mxu0 0
    %2047 = vmatmul.mubr.bf16.gmra.mrb[0].mxu0 %v1201
    %v2048 = vpop.f32.mrb[0].mxu0
    %v2049 = vadd.f32 %v287, %v2048
    %v2050 = vpop.f32.mrb[0].mxu0
    %v2051 = vpop.f32.mrb[0].mxu0
    %v2052 = vadd.f32 %v287, %v2051
    %v2053 = vpop.f32.mrb[0].mxu0
    %2054 = vmatprep.mubr.bf16.mxu0 0
    %2055 = vmatmul.mubr.bf16.gmra.mrb[0].mxu0 %v1204
    %v2056 = vpop.f32.mrb[0].mxu0
    %v2057 = vadd.f32 %v287, %v2056
    %v2058 = vpop.f32.mrb[0].mxu0
    %v2059 = vpop.f32.mrb[0].mxu0
    %v2060 = vadd.f32 %v287, %v2059
    %v2061 = vpop.f32.mrb[0].mxu0
    %2062 = vmatprep.mubr.bf16.mxu0 0
    %2063 = vmatmul.mubr.bf16.gmra.mrb[0].mxu0 %v1207
    %v2064 = vpop.f32.mrb[0].mxu0
    %v2065 = vadd.f32 %v287, %v2064
    %v2066 = vpop.f32.mrb[0].mxu0
    %v2067 = vpop.f32.mrb[0].mxu0
    %v2068 = vadd.f32 %v287, %v2067
    %v2069 = vpop.f32.mrb[0].mxu0
    %2070 = vmatprep.mubr.bf16.mxu0 0
    %2071 = vmatmul.mubr.bf16.gmra.mrb[0].mxu0 %v1210
    %v2072 = vpop.f32.mrb[0].mxu0
    %v2073 = vadd.f32 %v287, %v2072
    %v2074 = vpop.f32.mrb[0].mxu0
    %v2075 = vpop.f32.mrb[0].mxu0
    %v2076 = vadd.f32 %v287, %v2075
    %v2077 = vpop.f32.mrb[0].mxu0
    %2078 = vmatprep.mubr.bf16.mxu0 0
    %2079 = vmatmul.mubr.bf16.gmra.mrb[0].mxu0 %v1213
    %v2080 = vpop.f32.mrb[0].mxu0
    %v2081 = vadd.f32 %v287, %v2080
    %v2082 = vpop.f32.mrb[0].mxu0
    %v2083 = vpop.f32.mrb[0].mxu0
    %v2084 = vadd.f32 %v287, %v2083
    %v2085 = vpop.f32.mrb[0].mxu0
    %2086 = vmatprep.mubr.bf16.mxu0 0
    %2087 = vmatmul.mubr.bf16.gmra.mrb[0].mxu0 %v1216
    %v2088 = vpop.f32.mrb[0].mxu0
    %v2089 = vadd.f32 %v287, %v2088
    %v2090 = vpop.f32.mrb[0].mxu0
    %v2091 = vpop.f32.mrb[0].mxu0
    %v2092 = vadd.f32 %v287, %v2091
    %v2093 = vpop.f32.mrb[0].mxu0
    %2094 = vmatprep.mubr.bf16.mxu0 0
    %2095 = vmatmul.mubr.bf16.gmra.mrb[0].mxu0 %v1219
    %v2096 = vpop.f32.mrb[0].mxu0
    %v2097 = vadd.f32 %v287, %v2096
    %v2098 = vpop.f32.mrb[0].mxu0
    %v2099 = vpop.f32.mrb[0].mxu0
    %v2100 = vadd.f32 %v287, %v2099
    %v2101 = vpop.f32.mrb[0].mxu0
    %2102 = vmatprep.mubr.bf16.mxu0 0
    %2103 = vmatmul.mubr.bf16.gmra.mrb[0].mxu0 %v1222
    %v2104 = vpop.f32.mrb[0].mxu0
    %v2105 = vadd.f32 %v287, %v2104
    %v2106 = vpop.f32.mrb[0].mxu0
    %v2107 = vpop.f32.mrb[0].mxu0
    %v2108 = vadd.f32 %v287, %v2107
    %v2109 = vpop.f32.mrb[0].mxu0
    %2110 = vmatprep.mubr.bf16.mxu0 0
    %2111 = vmatmul.mubr.bf16.gmra.mrb[0].mxu0 %v1225
    %v2112 = vpop.f32.mrb[0].mxu0
    %v2113 = vadd.f32 %v287, %v2112
    %v2114 = vpop.f32.mrb[0].mxu0
    %v2115 = vpop.f32.mrb[0].mxu0
    %v2116 = vadd.f32 %v287, %v2115
    %v2117 = vpop.f32.mrb[0].mxu0
    %2118 = vmatprep.mubr.bf16.mxu0 0
    %2119 = vmatmul.mubr.bf16.gmra.mrb[0].mxu0 %v1228
    %v2120 = vpop.f32.mrb[0].mxu0
    %v2121 = vadd.f32 %v287, %v2120
    %v2122 = vpop.f32.mrb[0].mxu0
    %v2123 = vpop.f32.mrb[0].mxu0
    %v2124 = vadd.f32 %v287, %v2123
    %v2125 = vpop.f32.mrb[0].mxu0
    %2126 = vmatprep.mubr.bf16.mxu0 0
    %2127 = vmatmul.mubr.bf16.gmra.mrb[0].mxu0 %v1231
    %v2128 = vpop.f32.mrb[0].mxu0
    %v2129 = vadd.f32 %v287, %v2128
    %v2130 = vpop.f32.mrb[0].mxu0
    %v2131 = vpop.f32.mrb[0].mxu0
    %v2132 = vadd.f32 %v287, %v2131
    %v2133 = vpop.f32.mrb[0].mxu0
    %2134 = vmatprep.mubr.bf16.mxu0 0
    %2135 = vmatmul.mubr.bf16.gmra.mrb[0].mxu0 %v1234
    %v2136 = vpop.f32.mrb[0].mxu0
    %v2137 = vadd.f32 %v287, %v2136
    %v2138 = vpop.f32.mrb[0].mxu0
    %v2139 = vpop.f32.mrb[0].mxu0
    %v2140 = vadd.f32 %v287, %v2139
    %v2141 = vpop.f32.mrb[0].mxu0
    %2142 = vmatprep.mubr.bf16.mxu0 0
    %2143 = vmatmul.mubr.bf16.gmra.mrb[0].mxu0 %v1237
    %v2144 = vpop.f32.mrb[0].mxu0
    %v2145 = vadd.f32 %v287, %v2144
    %v2146 = vpop.f32.mrb[0].mxu0
    %v2147 = vpop.f32.mrb[0].mxu0
    %v2148 = vadd.f32 %v287, %v2147
    %v2149 = vpop.f32.mrb[0].mxu0
    %2150 = vmatprep.mubr.bf16.mxu0 0
    %2151 = vmatmul.mubr.bf16.gmra.mrb[0].mxu0 %v1240
    %v2152 = vpop.f32.mrb[0].mxu0
    %v2153 = vadd.f32 %v287, %v2152
    %v2154 = vpop.f32.mrb[0].mxu0
    %v2155 = vpop.f32.mrb[0].mxu0
    %v2156 = vadd.f32 %v287, %v2155
    %v2157 = vpop.f32.mrb[0].mxu0
    %2158 = vmatprep.mubr.bf16.mxu0 0
    %2159 = vmatmul.mubr.bf16.gmra.mrb[0].mxu0 %v1243
    %v2160 = vpop.f32.mrb[0].mxu0
    %v2161 = vadd.f32 %v287, %v2160
    %v2162 = vpop.f32.mrb[0].mxu0
    %v2163 = vpop.f32.mrb[0].mxu0
    %v2164 = vadd.f32 %v287, %v2163
    %v2165 = vpop.f32.mrb[0].mxu0
    %2166 = vmatprep.mubr.bf16.mxu0 0
    %2167 = vmatmul.mubr.bf16.gmra.mrb[0].mxu0 %v1246
    %v2168 = vpop.f32.mrb[0].mxu0
    %v2169 = vadd.f32 %v287, %v2168
    %v2170 = vpop.f32.mrb[0].mxu0
    %v2171 = vpop.f32.mrb[0].mxu0
    %v2172 = vadd.f32 %v287, %v2171
    %v2173 = vpop.f32.mrb[0].mxu0
    %2174 = vmatprep.mubr.bf16.mxu0 0
    %2175 = vmatmul.mubr.bf16.gmra.mrb[0].mxu0 %v1249
    %v2176 = vpop.f32.mrb[0].mxu0
    %v2177 = vadd.f32 %v287, %v2176
    %v2178 = vpop.f32.mrb[0].mxu0
    %v2179 = vpop.f32.mrb[0].mxu0
    %v2180 = vadd.f32 %v287, %v2179
    %v2181 = vpop.f32.mrb[0].mxu0
    %2182 = vmatprep.mubr.bf16.mxu0 0
    %2183 = vmatmul.mubr.bf16.gmra.mrb[0].mxu0 %v1252
    %v2184 = vpop.f32.mrb[0].mxu0
    %v2185 = vadd.f32 %v287, %v2184
    %v2186 = vpop.f32.mrb[0].mxu0
    %v2187 = vpop.f32.mrb[0].mxu0
    %v2188 = vadd.f32 %v287, %v2187
    %v2189 = vpop.f32.mrb[0].mxu0
    %2190 = vmatprep.mubr.bf16.mxu0 0
    %2191 = vmatmul.mubr.bf16.gmra.mrb[0].mxu0 %v1255
    %v2192 = vpop.f32.mrb[0].mxu0
    %v2193 = vadd.f32 %v287, %v2192
    %v2194 = vpop.f32.mrb[0].mxu0
    %v2195 = vpop.f32.mrb[0].mxu0
    %v2196 = vadd.f32 %v287, %v2195
    %v2197 = vpop.f32.mrb[0].mxu0
    %2198 = vmatprep.mubr.bf16.mxu0 0
    %2199 = vmatmul.mubr.bf16.gmra.mrb[0].mxu0 %v1258
    %v2200 = vpop.f32.mrb[0].mxu0
    %v2201 = vadd.f32 %v287, %v2200
    %v2202 = vpop.f32.mrb[0].mxu0
    %v2203 = vpop.f32.mrb[0].mxu0
    %v2204 = vadd.f32 %v287, %v2203
    %v2205 = vpop.f32.mrb[0].mxu0
    %2206 = vmatprep.mubr.bf16.mxu0 0
    %2207 = vmatmul.mubr.bf16.gmra.mrb[0].mxu0 %v1261
    %v2208 = vpop.f32.mrb[0].mxu0
    %v2209 = vadd.f32 %v287, %v2208
    %v2210 = vpop.f32.mrb[0].mxu0
    %v2211 = vpop.f32.mrb[0].mxu0
    %v2212 = vadd.f32 %v287, %v2211
    %v2213 = vpop.f32.mrb[0].mxu0
    %2214 = vmatprep.mubr.bf16.mxu0 0
    %2215 = vmatmul.mubr.bf16.gmra.mrb[0].mxu0 %v1264
    %v2216 = vpop.f32.mrb[0].mxu0
    %v2217 = vadd.f32 %v287, %v2216
    %v2218 = vpop.f32.mrb[0].mxu0
    %v2219 = vpop.f32.mrb[0].mxu0
    %v2220 = vadd.f32 %v287, %v2219
    %v2221 = vpop.f32.mrb[0].mxu0
    %2222 = vmatprep.mubr.bf16.mxu0 0
    %2223 = vmatmul.mubr.bf16.gmra.mrb[0].mxu0 %v1267
    %v2224 = vpop.f32.mrb[0].mxu0
    %v2225 = vadd.f32 %v287, %v2224
    %v2226 = vpop.f32.mrb[0].mxu0
    %v2227 = vpop.f32.mrb[0].mxu0
    %v2228 = vadd.f32 %v287, %v2227
    %v2229 = vpop.f32.mrb[0].mxu0
    %2230 = vmatprep.mubr.bf16.mxu0 0
    %2231 = vmatmul.mubr.bf16.gmra.mrb[0].mxu0 %v1270
    %v2232 = vpop.f32.mrb[0].mxu0
    %v2233 = vadd.f32 %v287, %v2232
    %v2234 = vpop.f32.mrb[0].mxu0
    %v2235 = vpop.f32.mrb[0].mxu0
    %v2236 = vadd.f32 %v287, %v2235
    %v2237 = vpop.f32.mrb[0].mxu0
    %2238 = vmatprep.mubr.bf16.mxu0 0
    %2239 = vmatmul.mubr.bf16.gmra.mrb[0].mxu0 %v1273
    %v2240 = vpop.f32.mrb[0].mxu0
    %v2241 = vadd.f32 %v287, %v2240
    %v2242 = vpop.f32.mrb[0].mxu0
    %v2243 = vpop.f32.mrb[0].mxu0
    %v2244 = vadd.f32 %v287, %v2243
    %v2245 = vpop.f32.mrb[0].mxu0
    %2246 = vmatprep.mubr.bf16.mxu0 0
    %2247 = vmatmul.mubr.bf16.gmra.mrb[0].mxu0 %v1276
    %v2248 = vpop.f32.mrb[0].mxu0
    %v2249 = vadd.f32 %v287, %v2248
    %v2250 = vpop.f32.mrb[0].mxu0
    %v2251 = vpop.f32.mrb[0].mxu0
    %v2252 = vadd.f32 %v287, %v2251
    %v2253 = vpop.f32.mrb[0].mxu0
    %2254 = vmatprep.mubr.bf16.mxu0 0
    %2255 = vmatmul.mubr.bf16.gmra.mrb[0].mxu0 %v1279
    %v2256 = vpop.f32.mrb[0].mxu0
    %v2257 = vadd.f32 %v287, %v2256
    %v2258 = vpop.f32.mrb[0].mxu0
    %v2259 = vpop.f32.mrb[0].mxu0
    %v2260 = vadd.f32 %v287, %v2259
    %v2261 = vpop.f32.mrb[0].mxu0
    %2262 = vmatprep.mubr.bf16.mxu0 0
    %2263 = vmatmul.mubr.bf16.gmra.mrb[0].mxu0 %v1282
    %v2264 = vpop.f32.mrb[0].mxu0
    %v2265 = vadd.f32 %v287, %v2264
    %v2266 = vpop.f32.mrb[0].mxu0
    %v2267 = vpop.f32.mrb[0].mxu0
    %v2268 = vadd.f32 %v287, %v2267
    %v2269 = vpop.f32.mrb[0].mxu0
    %2270 = vmatprep.mubr.bf16.mxu0 0
    %2271 = vmatmul.mubr.bf16.gmra.mrb[0].mxu0 %v1285
    %v2272 = vpop.f32.mrb[0].mxu0
    %v2273 = vadd.f32 %v287, %v2272
    %v2274 = vpop.f32.mrb[0].mxu0
    %v2275 = vpop.f32.mrb[0].mxu0
    %v2276 = vadd.f32 %v287, %v2275
    %v2277 = vpop.f32.mrb[0].mxu0
    %2278 = vmatprep.mubr.bf16.mxu0 0
    %2279 = vmatmul.mubr.bf16.gmra.mrb[0].mxu0 %v1288
    %v2280 = vpop.f32.mrb[0].mxu0
    %v2281 = vadd.f32 %v287, %v2280
    %v2282 = vpop.f32.mrb[0].mxu0
    %v2283 = vpop.f32.mrb[0].mxu0
    %v2284 = vadd.f32 %v287, %v2283
    %v2285 = vpop.f32.mrb[0].mxu0
    %2286 = vmatprep.mubr.bf16.mxu0 0
    %2287 = vmatmul.mubr.bf16.gmra.mrb[0].mxu0 %v1291
    %v2288 = vpop.f32.mrb[0].mxu0
    %v2289 = vadd.f32 %v287, %v2288
    %v2290 = vpop.f32.mrb[0].mxu0
    %v2291 = vpop.f32.mrb[0].mxu0
    %v2292 = vadd.f32 %v287, %v2291
    %v2293 = vpop.f32.mrb[0].mxu0
    %2294 = vmatprep.mubr.bf16.mxu0 0
    %2295 = vmatmul.mubr.bf16.gmra.mrb[0].mxu0 %v1294
    %v2296 = vpop.f32.mrb[0].mxu0
    %v2297 = vadd.f32 %v287, %v2296
    %v2298 = vpop.f32.mrb[0].mxu0
    %v2299 = vpop.f32.mrb[0].mxu0
    %v2300 = vadd.f32 %v287, %v2299
    %v2301 = vpop.f32.mrb[0].mxu0
    %2302 = vmatprep.mubr.bf16.mxu0 0
    %2303 = vmatmul.mubr.bf16.gmra.mrb[0].mxu0 %v1297
    %v2304 = vpop.f32.mrb[0].mxu0
    %v2305 = vadd.f32 %v287, %v2304
    %v2306 = vpop.f32.mrb[0].mxu0
    %v2307 = vpop.f32.mrb[0].mxu0
    %v2308 = vadd.f32 %v287, %v2307
    %v2309 = vpop.f32.mrb[0].mxu0
    %2310 = vmatprep.mubr.bf16.mxu0 0
    %2311 = vmatmul.mubr.bf16.gmra.mrb[0].mxu0 %v1300
    %v2312 = vpop.f32.mrb[0].mxu0
    %v2313 = vadd.f32 %v287, %v2312
    %v2314 = vpop.f32.mrb[0].mxu0
    %v2315 = vpop.f32.mrb[0].mxu0
    %v2316 = vadd.f32 %v287, %v2315
    %v2317 = vpop.f32.mrb[0].mxu0
    %2318 = vmatprep.mubr.bf16.mxu0 0
    %2319 = vmatmul.mubr.bf16.gmra.mrb[0].mxu0 %v1303
    %v2320 = vpop.f32.mrb[0].mxu0
    %v2321 = vadd.f32 %v287, %v2320
    %v2322 = vpop.f32.mrb[0].mxu0
    %v2323 = vpop.f32.mrb[0].mxu0
    %v2324 = vadd.f32 %v287, %v2323
    %v2325 = vpop.f32.mrb[0].mxu0
    %2326 = vmatprep.mubr.bf16.mxu0 0
    %2327 = vmatmul.mubr.bf16.gmra.mrb[0].mxu0 %v1306
    %v2328 = vpop.f32.mrb[0].mxu0
    %v2329 = vadd.f32 %v287, %v2328
    %v2330 = vpop.f32.mrb[0].mxu0
    %v2331 = vpop.f32.mrb[0].mxu0
    %v2332 = vadd.f32 %v287, %v2331
    %v2333 = vpop.f32.mrb[0].mxu0
    %2334 = vmatprep.mubr.bf16.mxu0 0
    %2335 = vmatmul.mubr.bf16.gmra.mrb[0].mxu0 %v1309
    %v2336 = vpop.f32.mrb[0].mxu0
    %v2337 = vadd.f32 %v287, %v2336
    %v2338 = vpop.f32.mrb[0].mxu0
    %v2339 = vpop.f32.mrb[0].mxu0
    %v2340 = vadd.f32 %v287, %v2339
    %v2341 = vpop.f32.mrb[0].mxu0
    %2342 = vmatprep.mubr.bf16.mxu0 0
    %2343 = vmatmul.mubr.bf16.gmra.mrb[0].mxu0 %v1312
    %v2344 = vpop.f32.mrb[0].mxu0
    %v2345 = vadd.f32 %v287, %v2344
    %v2346 = vpop.f32.mrb[0].mxu0
    %v2347 = vpop.f32.mrb[0].mxu0
    %v2348 = vadd.f32 %v287, %v2347
    %v2349 = vpop.f32.mrb[0].mxu0
    %2350 = vmatprep.mubr.bf16.mxu0 0
    %2351 = vmatmul.mubr.bf16.gmra.mrb[0].mxu0 %v1315
    %v2352 = vpop.f32.mrb[0].mxu0
    %v2353 = vadd.f32 %v287, %v2352
    %v2354 = vpop.f32.mrb[0].mxu0
    %v2355 = vpop.f32.mrb[0].mxu0
    %v2356 = vadd.f32 %v287, %v2355
    %v2357 = vpop.f32.mrb[0].mxu0
    %2358 = vmatprep.mubr.bf16.mxu0 0
    %2359 = vmatmul.mubr.bf16.gmra.mrb[0].mxu0 %v1318
    %v2360 = vpop.f32.mrb[0].mxu0
    %v2361 = vadd.f32 %v287, %v2360
    %v2362 = vpop.f32.mrb[0].mxu0
    %v2363 = vpop.f32.mrb[0].mxu0
    %v2364 = vadd.f32 %v287, %v2363
    %v2365 = vpop.f32.mrb[0].mxu0
    %2366 = vmatprep.mubr.bf16.mxu0 0
    %2367 = vmatmul.mubr.bf16.gmra.mrb[0].mxu0 %v1321
    %v2368 = vpop.f32.mrb[0].mxu0
    %v2369 = vadd.f32 %v287, %v2368
    %v2370 = vpop.f32.mrb[0].mxu0
    %v2371 = vpop.f32.mrb[0].mxu0
    %v2372 = vadd.f32 %v287, %v2371
    %v2373 = vpop.f32.mrb[0].mxu0
    %2374 = vmatprep.mubr.bf16.mxu0 0
    %2375 = vmatmul.mubr.bf16.gmra.mrb[0].mxu0 %v1324
    %v2376 = vpop.f32.mrb[0].mxu0
    %v2377 = vadd.f32 %v287, %v2376
    %v2378 = vpop.f32.mrb[0].mxu0
    %v2379 = vpop.f32.mrb[0].mxu0
    %v2380 = vadd.f32 %v287, %v2379
    %v2381 = vpop.f32.mrb[0].mxu0
    %2382 = vdwg.mxu0
    %v2383 = vmax.f32 %v1361, 0.0
    %v2384 = vmax.f32 %v1364, 0.0
    %v2385 = vmax.f32 %v1369, 0.0
    %v2386 = vmax.f32 %v1372, 0.0
    %v2387 = vmax.f32 %v1377, 0.0
    %v2388 = vmax.f32 %v1380, 0.0
    %v2389 = vmax.f32 %v1385, 0.0
    %v2390 = vmax.f32 %v1388, 0.0
    %v2391 = vmax.f32 %v1393, 0.0
    %v2392 = vmax.f32 %v1396, 0.0
    %v2393 = vmax.f32 %v1401, 0.0
    %v2394 = vmax.f32 %v1404, 0.0
    %v2395 = vmax.f32 %v1409, 0.0
    %v2396 = vmax.f32 %v1412, 0.0
    %v2397 = vmax.f32 %v1417, 0.0
    %v2398 = vmax.f32 %v1420, 0.0
    %v2399 = vmax.f32 %v1425, 0.0
    %v2400 = vmax.f32 %v1428, 0.0
    %v2401 = vmax.f32 %v1433, 0.0
    %v2402 = vmax.f32 %v1436, 0.0
    %v2403 = vmax.f32 %v1441, 0.0
    %v2404 = vmax.f32 %v1444, 0.0
    %v2405 = vmax.f32 %v1449, 0.0
    %v2406 = vmax.f32 %v1452, 0.0
    %v2407 = vmax.f32 %v1457, 0.0
    %v2408 = vmax.f32 %v1460, 0.0
    %v2409 = vmax.f32 %v1465, 0.0
    %v2410 = vmax.f32 %v1468, 0.0
    %v2411 = vmax.f32 %v1473, 0.0
    %v2412 = vmax.f32 %v1476, 0.0
    %v2413 = vmax.f32 %v1481, 0.0
    %v2414 = vmax.f32 %v1484, 0.0
    %v2415 = vmax.f32 %v1489, 0.0
    %v2416 = vmax.f32 %v1492, 0.0
    %v2417 = vmax.f32 %v1497, 0.0
    %v2418 = vmax.f32 %v1500, 0.0
    %v2419 = vmax.f32 %v1505, 0.0
    %v2420 = vmax.f32 %v1508, 0.0
    %v2421 = vmax.f32 %v1513, 0.0
    %v2422 = vmax.f32 %v1516, 0.0
    %v2423 = vmax.f32 %v1521, 0.0
    %v2424 = vmax.f32 %v1524, 0.0
    %v2425 = vmax.f32 %v1529, 0.0
    %v2426 = vmax.f32 %v1532, 0.0
    %v2427 = vmax.f32 %v1537, 0.0
    %v2428 = vmax.f32 %v1540, 0.0
    %v2429 = vmax.f32 %v1545, 0.0
    %v2430 = vmax.f32 %v1548, 0.0
    %v2431 = vmax.f32 %v1553, 0.0
    %v2432 = vmax.f32 %v1556, 0.0
    %v2433 = vmax.f32 %v1561, 0.0
    %v2434 = vmax.f32 %v1564, 0.0
    %v2435 = vmax.f32 %v1569, 0.0
    %v2436 = vmax.f32 %v1572, 0.0
    %v2437 = vmax.f32 %v1577, 0.0
    %v2438 = vmax.f32 %v1580, 0.0
    %v2439 = vmax.f32 %v1585, 0.0
    %v2440 = vmax.f32 %v1588, 0.0
    %v2441 = vmax.f32 %v1593, 0.0
    %v2442 = vmax.f32 %v1596, 0.0
    %v2443 = vmax.f32 %v1601, 0.0
    %v2444 = vmax.f32 %v1604, 0.0
    %v2445 = vmax.f32 %v1609, 0.0
    %v2446 = vmax.f32 %v1612, 0.0
    %v2447 = vmax.f32 %v1617, 0.0
    %v2448 = vmax.f32 %v1620, 0.0
    %v2449 = vmax.f32 %v1625, 0.0
    %v2450 = vmax.f32 %v1628, 0.0
    %v2451 = vmax.f32 %v1633, 0.0
    %v2452 = vmax.f32 %v1636, 0.0
    %v2453 = vmax.f32 %v1641, 0.0
    %v2454 = vmax.f32 %v1644, 0.0
    %v2455 = vmax.f32 %v1649, 0.0
    %v2456 = vmax.f32 %v1652, 0.0
    %v2457 = vmax.f32 %v1657, 0.0
    %v2458 = vmax.f32 %v1660, 0.0
    %v2459 = vmax.f32 %v1665, 0.0
    %v2460 = vmax.f32 %v1668, 0.0
    %v2461 = vmax.f32 %v1673, 0.0
    %v2462 = vmax.f32 %v1676, 0.0
    %v2463 = vmax.f32 %v1681, 0.0
    %v2464 = vmax.f32 %v1684, 0.0
    %v2465 = vmax.f32 %v1689, 0.0
    %v2466 = vmax.f32 %v1692, 0.0
    %v2467 = vmax.f32 %v1697, 0.0
    %v2468 = vmax.f32 %v1700, 0.0
    %v2469 = vmax.f32 %v1705, 0.0
    %v2470 = vmax.f32 %v1708, 0.0
    %v2471 = vmax.f32 %v1713, 0.0
    %v2472 = vmax.f32 %v1716, 0.0
    %v2473 = vmax.f32 %v1721, 0.0
    %v2474 = vmax.f32 %v1724, 0.0
    %v2475 = vmax.f32 %v1729, 0.0
    %v2476 = vmax.f32 %v1732, 0.0
    %v2477 = vmax.f32 %v1737, 0.0
    %v2478 = vmax.f32 %v1740, 0.0
    %v2479 = vmax.f32 %v1745, 0.0
    %v2480 = vmax.f32 %v1748, 0.0
    %v2481 = vmax.f32 %v1753, 0.0
    %v2482 = vmax.f32 %v1756, 0.0
    %v2483 = vmax.f32 %v1761, 0.0
    %v2484 = vmax.f32 %v1764, 0.0
    %v2485 = vmax.f32 %v1769, 0.0
    %v2486 = vmax.f32 %v1772, 0.0
    %v2487 = vmax.f32 %v1777, 0.0
    %v2488 = vmax.f32 %v1780, 0.0
    %v2489 = vmax.f32 %v1785, 0.0
    %v2490 = vmax.f32 %v1788, 0.0
    %v2491 = vmax.f32 %v1793, 0.0
    %v2492 = vmax.f32 %v1796, 0.0
    %v2493 = vmax.f32 %v1801, 0.0
    %v2494 = vmax.f32 %v1804, 0.0
    %v2495 = vmax.f32 %v1809, 0.0
    %v2496 = vmax.f32 %v1812, 0.0
    %v2497 = vmax.f32 %v1817, 0.0
    %v2498 = vmax.f32 %v1820, 0.0
    %v2499 = vmax.f32 %v1825, 0.0
    %v2500 = vmax.f32 %v1828, 0.0
    %v2501 = vmax.f32 %v1833, 0.0
    %v2502 = vmax.f32 %v1836, 0.0
    %v2503 = vmax.f32 %v1841, 0.0
    %v2504 = vmax.f32 %v1844, 0.0
    %v2505 = vmax.f32 %v1849, 0.0
    %v2506 = vmax.f32 %v1852, 0.0
    %v2507 = vmax.f32 %v1857, 0.0
    %v2508 = vmax.f32 %v1860, 0.0
    %v2509 = vmax.f32 %v1865, 0.0
    %v2510 = vmax.f32 %v1868, 0.0
    %v2511 = vmax.f32 %v1873, 0.0
    %v2512 = vmax.f32 %v1876, 0.0
    %v2513 = vmax.f32 %v1881, 0.0
    %v2514 = vmax.f32 %v1884, 0.0
    %v2515 = vmax.f32 %v1889, 0.0
    %v2516 = vmax.f32 %v1892, 0.0
    %v2517 = vmax.f32 %v1897, 0.0
    %v2518 = vmax.f32 %v1900, 0.0
    %v2519 = vmax.f32 %v1905, 0.0
    %v2520 = vmax.f32 %v1908, 0.0
    %v2521 = vmax.f32 %v1913, 0.0
    %v2522 = vmax.f32 %v1916, 0.0
    %v2523 = vmax.f32 %v1921, 0.0
    %v2524 = vmax.f32 %v1924, 0.0
    %v2525 = vmax.f32 %v1929, 0.0
    %v2526 = vmax.f32 %v1932, 0.0
    %v2527 = vmax.f32 %v1937, 0.0
    %v2528 = vmax.f32 %v1940, 0.0
    %v2529 = vmax.f32 %v1945, 0.0
    %v2530 = vmax.f32 %v1948, 0.0
    %v2531 = vmax.f32 %v1953, 0.0
    %v2532 = vmax.f32 %v1956, 0.0
    %v2533 = vmax.f32 %v1961, 0.0
    %v2534 = vmax.f32 %v1964, 0.0
    %v2535 = vmax.f32 %v1969, 0.0
    %v2536 = vmax.f32 %v1972, 0.0
    %v2537 = vmax.f32 %v1977, 0.0
    %v2538 = vmax.f32 %v1980, 0.0
    %v2539 = vmax.f32 %v1985, 0.0
    %v2540 = vmax.f32 %v1988, 0.0
    %v2541 = vmax.f32 %v1993, 0.0
    %v2542 = vmax.f32 %v1996, 0.0
    %v2543 = vmax.f32 %v2001, 0.0
    %v2544 = vmax.f32 %v2004, 0.0
    %v2545 = vmax.f32 %v2009, 0.0
    %v2546 = vmax.f32 %v2012, 0.0
    %v2547 = vmax.f32 %v2017, 0.0
    %v2548 = vmax.f32 %v2020, 0.0
    %v2549 = vmax.f32 %v2025, 0.0
    %v2550 = vmax.f32 %v2028, 0.0
    %v2551 = vmax.f32 %v2033, 0.0
    %v2552 = vmax.f32 %v2036, 0.0
    %v2553 = vmax.f32 %v2041, 0.0
    %v2554 = vmax.f32 %v2044, 0.0
    %v2555 = vmax.f32 %v2049, 0.0
    %v2556 = vmax.f32 %v2052, 0.0
    %v2557 = vmax.f32 %v2057, 0.0
    %v2558 = vmax.f32 %v2060, 0.0
    %v2559 = vmax.f32 %v2065, 0.0
    %v2560 = vmax.f32 %v2068, 0.0
    %v2561 = vmax.f32 %v2073, 0.0
    %v2562 = vmax.f32 %v2076, 0.0
    %v2563 = vmax.f32 %v2081, 0.0
    %v2564 = vmax.f32 %v2084, 0.0
    %v2565 = vmax.f32 %v2089, 0.0
    %v2566 = vmax.f32 %v2092, 0.0
    %v2567 = vmax.f32 %v2097, 0.0
    %v2568 = vmax.f32 %v2100, 0.0
    %v2569 = vmax.f32 %v2105, 0.0
    %v2570 = vmax.f32 %v2108, 0.0
    %v2571 = vmax.f32 %v2113, 0.0
    %v2572 = vmax.f32 %v2116, 0.0
    %v2573 = vmax.f32 %v2121, 0.0
    %v2574 = vmax.f32 %v2124, 0.0
    %v2575 = vmax.f32 %v2129, 0.0
    %v2576 = vmax.f32 %v2132, 0.0
    %v2577 = vmax.f32 %v2137, 0.0
    %v2578 = vmax.f32 %v2140, 0.0
    %v2579 = vmax.f32 %v2145, 0.0
    %v2580 = vmax.f32 %v2148, 0.0
    %v2581 = vmax.f32 %v2153, 0.0
    %v2582 = vmax.f32 %v2156, 0.0
    %v2583 = vmax.f32 %v2161, 0.0
    %v2584 = vmax.f32 %v2164, 0.0
    %v2585 = vmax.f32 %v2169, 0.0
    %v2586 = vmax.f32 %v2172, 0.0
    %v2587 = vmax.f32 %v2177, 0.0
    %v2588 = vmax.f32 %v2180, 0.0
    %v2589 = vmax.f32 %v2185, 0.0
    %v2590 = vmax.f32 %v2188, 0.0
    %v2591 = vmax.f32 %v2193, 0.0
    %v2592 = vmax.f32 %v2196, 0.0
    %v2593 = vmax.f32 %v2201, 0.0
    %v2594 = vmax.f32 %v2204, 0.0
    %v2595 = vmax.f32 %v2209, 0.0
    %v2596 = vmax.f32 %v2212, 0.0
    %v2597 = vmax.f32 %v2217, 0.0
    %v2598 = vmax.f32 %v2220, 0.0
    %v2599 = vmax.f32 %v2225, 0.0
    %v2600 = vmax.f32 %v2228, 0.0
    %v2601 = vmax.f32 %v2233, 0.0
    %v2602 = vmax.f32 %v2236, 0.0
    %v2603 = vmax.f32 %v2241, 0.0
    %v2604 = vmax.f32 %v2244, 0.0
    %v2605 = vmax.f32 %v2249, 0.0
    %v2606 = vmax.f32 %v2252, 0.0
    %v2607 = vmax.f32 %v2257, 0.0
    %v2608 = vmax.f32 %v2260, 0.0
    %v2609 = vmax.f32 %v2265, 0.0
    %v2610 = vmax.f32 %v2268, 0.0
    %v2611 = vmax.f32 %v2273, 0.0
    %v2612 = vmax.f32 %v2276, 0.0
    %v2613 = vmax.f32 %v2281, 0.0
    %v2614 = vmax.f32 %v2284, 0.0
    %v2615 = vmax.f32 %v2289, 0.0
    %v2616 = vmax.f32 %v2292, 0.0
    %v2617 = vmax.f32 %v2297, 0.0
    %v2618 = vmax.f32 %v2300, 0.0
    %v2619 = vmax.f32 %v2305, 0.0
    %v2620 = vmax.f32 %v2308, 0.0
    %v2621 = vmax.f32 %v2313, 0.0
    %v2622 = vmax.f32 %v2316, 0.0
    %v2623 = vmax.f32 %v2321, 0.0
    %v2624 = vmax.f32 %v2324, 0.0
    %v2625 = vmax.f32 %v2329, 0.0
    %v2626 = vmax.f32 %v2332, 0.0
    %v2627 = vmax.f32 %v2337, 0.0
    %v2628 = vmax.f32 %v2340, 0.0
    %v2629 = vmax.f32 %v2345, 0.0
    %v2630 = vmax.f32 %v2348, 0.0
    %v2631 = vmax.f32 %v2353, 0.0
    %v2632 = vmax.f32 %v2356, 0.0
    %v2633 = vmax.f32 %v2361, 0.0
    %v2634 = vmax.f32 %v2364, 0.0
    %v2635 = vmax.f32 %v2369, 0.0
    %v2636 = vmax.f32 %v2372, 0.0
    %v2637 = vmax.f32 %v2377, 0.0
    %v2638 = vmax.f32 %v2380, 0.0
    %v2639 = vadd.f32 %v2383, %v2384
    %v2640 = vadd.f32 %v2639, %v2385
    %v2641 = vadd.f32 %v2640, %v2386
    %v2642 = vadd.f32 %v2641, %v2387
    %v2643 = vadd.f32 %v2642, %v2388
    %v2644 = vadd.f32 %v2643, %v2389
    %v2645 = vadd.f32 %v2644, %v2390
    %v2646 = vadd.f32 %v2645, %v2391
    %v2647 = vadd.f32 %v2646, %v2392
    %v2648 = vadd.f32 %v2647, %v2393
    %v2649 = vadd.f32 %v2648, %v2394
    %v2650 = vadd.f32 %v2649, %v2395
    %v2651 = vadd.f32 %v2650, %v2396
    %v2652 = vadd.f32 %v2651, %v2397
    %v2653 = vadd.f32 %v2652, %v2398
    %v2654 = vadd.f32 %v2653, %v2399
    %v2655 = vadd.f32 %v2654, %v2400
    %v2656 = vadd.f32 %v2655, %v2401
    %v2657 = vadd.f32 %v2656, %v2402
    %v2658 = vadd.f32 %v2657, %v2403
    %v2659 = vadd.f32 %v2658, %v2404
    %v2660 = vadd.f32 %v2659, %v2405
    %v2661 = vadd.f32 %v2660, %v2406
    %v2662 = vadd.f32 %v2661, %v2407
    %v2663 = vadd.f32 %v2662, %v2408
    %v2664 = vadd.f32 %v2663, %v2409
    %v2665 = vadd.f32 %v2664, %v2410
    %v2666 = vadd.f32 %v2665, %v2411
    %v2667 = vadd.f32 %v2666, %v2412
    %v2668 = vadd.f32 %v2667, %v2413
    %v2669 = vadd.f32 %v2668, %v2414
    %v2670 = vrot.slane %v2669, 4
    %v2671 = vadd.f32 %v2669, %v2670
    %v2672 = vrot.slane %v2671, 2
    %v2673 = vadd.f32 %v2671, %v2672
    %v2674 = vrot.slane %v2673, 1
    %v2675 = vadd.f32 %v2673, %v2674
    %v2676 = vadd.f32 %v2415, %v2416
    %v2677 = vadd.f32 %v2676, %v2417
    %v2678 = vadd.f32 %v2677, %v2418
    %v2679 = vadd.f32 %v2678, %v2419
    %v2680 = vadd.f32 %v2679, %v2420
    %v2681 = vadd.f32 %v2680, %v2421
    %v2682 = vadd.f32 %v2681, %v2422
    %v2683 = vadd.f32 %v2682, %v2423
    %v2684 = vadd.f32 %v2683, %v2424
    %v2685 = vadd.f32 %v2684, %v2425
    %v2686 = vadd.f32 %v2685, %v2426
    %v2687 = vadd.f32 %v2686, %v2427
    %v2688 = vadd.f32 %v2687, %v2428
    %v2689 = vadd.f32 %v2688, %v2429
    %v2690 = vadd.f32 %v2689, %v2430
    %v2691 = vadd.f32 %v2690, %v2431
    %v2692 = vadd.f32 %v2691, %v2432
    %v2693 = vadd.f32 %v2692, %v2433
    %v2694 = vadd.f32 %v2693, %v2434
    %v2695 = vadd.f32 %v2694, %v2435
    %v2696 = vadd.f32 %v2695, %v2436
    %v2697 = vadd.f32 %v2696, %v2437
    %v2698 = vadd.f32 %v2697, %v2438
    %v2699 = vadd.f32 %v2698, %v2439
    %v2700 = vadd.f32 %v2699, %v2440
    %v2701 = vadd.f32 %v2700, %v2441
    %v2702 = vadd.f32 %v2701, %v2442
    %v2703 = vadd.f32 %v2702, %v2443
    %v2704 = vadd.f32 %v2703, %v2444
    %v2705 = vadd.f32 %v2704, %v2445
    %v2706 = vadd.f32 %v2705, %v2446
    %v2707 = vrot.slane %v2706, 4
    %v2708 = vadd.f32 %v2706, %v2707
    %v2709 = vrot.slane %v2708, 2
    %v2710 = vadd.f32 %v2708, %v2709
    %v2711 = vrot.slane %v2710, 1
    %v2712 = vadd.f32 %v2710, %v2711
    %v2713 = vadd.f32 %v2447, %v2448
    %v2714 = vadd.f32 %v2713, %v2449
    %v2715 = vadd.f32 %v2714, %v2450
    %v2716 = vadd.f32 %v2715, %v2451
    %v2717 = vadd.f32 %v2716, %v2452
    %v2718 = vadd.f32 %v2717, %v2453
    %v2719 = vadd.f32 %v2718, %v2454
    %v2720 = vadd.f32 %v2719, %v2455
    %v2721 = vadd.f32 %v2720, %v2456
    %v2722 = vadd.f32 %v2721, %v2457
    %v2723 = vadd.f32 %v2722, %v2458
    %v2724 = vadd.f32 %v2723, %v2459
    %v2725 = vadd.f32 %v2724, %v2460
    %v2726 = vadd.f32 %v2725, %v2461
    %v2727 = vadd.f32 %v2726, %v2462
    %v2728 = vadd.f32 %v2727, %v2463
    %v2729 = vadd.f32 %v2728, %v2464
    %v2730 = vadd.f32 %v2729, %v2465
    %v2731 = vadd.f32 %v2730, %v2466
    %v2732 = vadd.f32 %v2731, %v2467
    %v2733 = vadd.f32 %v2732, %v2468
    %v2734 = vadd.f32 %v2733, %v2469
    %v2735 = vadd.f32 %v2734, %v2470
    %v2736 = vadd.f32 %v2735, %v2471
    %v2737 = vadd.f32 %v2736, %v2472
    %v2738 = vadd.f32 %v2737, %v2473
    %v2739 = vadd.f32 %v2738, %v2474
    %v2740 = vadd.f32 %v2739, %v2475
    %v2741 = vadd.f32 %v2740, %v2476
    %v2742 = vadd.f32 %v2741, %v2477
    %v2743 = vadd.f32 %v2742, %v2478
    %v2744 = vrot.slane %v2743, 4
    %v2745 = vadd.f32 %v2743, %v2744
    %v2746 = vrot.slane %v2745, 2
    %v2747 = vadd.f32 %v2745, %v2746
    %v2748 = vrot.slane %v2747, 1
    %v2749 = vadd.f32 %v2747, %v2748
    %v2750 = vadd.f32 %v2479, %v2480
    %v2751 = vadd.f32 %v2750, %v2481
    %v2752 = vadd.f32 %v2751, %v2482
    %v2753 = vadd.f32 %v2752, %v2483
    %v2754 = vadd.f32 %v2753, %v2484
    %v2755 = vadd.f32 %v2754, %v2485
    %v2756 = vadd.f32 %v2755, %v2486
    %v2757 = vadd.f32 %v2756, %v2487
    %v2758 = vadd.f32 %v2757, %v2488
    %v2759 = vadd.f32 %v2758, %v2489
    %v2760 = vadd.f32 %v2759, %v2490
    %v2761 = vadd.f32 %v2760, %v2491
    %v2762 = vadd.f32 %v2761, %v2492
    %v2763 = vadd.f32 %v2762, %v2493
    %v2764 = vadd.f32 %v2763, %v2494
    %v2765 = vadd.f32 %v2764, %v2495
    %v2766 = vadd.f32 %v2765, %v2496
    %v2767 = vadd.f32 %v2766, %v2497
    %v2768 = vadd.f32 %v2767, %v2498
    %v2769 = vadd.f32 %v2768, %v2499
    %v2770 = vadd.f32 %v2769, %v2500
    %v2771 = vadd.f32 %v2770, %v2501
    %v2772 = vadd.f32 %v2771, %v2502
    %v2773 = vadd.f32 %v2772, %v2503
    %v2774 = vadd.f32 %v2773, %v2504
    %v2775 = vadd.f32 %v2774, %v2505
    %v2776 = vadd.f32 %v2775, %v2506
    %v2777 = vadd.f32 %v2776, %v2507
    %v2778 = vadd.f32 %v2777, %v2508
    %v2779 = vadd.f32 %v2778, %v2509
    %v2780 = vadd.f32 %v2779, %v2510
    %v2781 = vrot.slane %v2780, 4
    %v2782 = vadd.f32 %v2780, %v2781
    %v2783 = vrot.slane %v2782, 2
    %v2784 = vadd.f32 %v2782, %v2783
    %v2785 = vrot.slane %v2784, 1
    %v2786 = vadd.f32 %v2784, %v2785
    %v2787 = vadd.f32 %v2511, %v2512
    %v2788 = vadd.f32 %v2787, %v2513
    %v2789 = vadd.f32 %v2788, %v2514
    %v2790 = vadd.f32 %v2789, %v2515
    %v2791 = vadd.f32 %v2790, %v2516
    %v2792 = vadd.f32 %v2791, %v2517
    %v2793 = vadd.f32 %v2792, %v2518
    %v2794 = vadd.f32 %v2793, %v2519
    %v2795 = vadd.f32 %v2794, %v2520
    %v2796 = vadd.f32 %v2795, %v2521
    %v2797 = vadd.f32 %v2796, %v2522
    %v2798 = vadd.f32 %v2797, %v2523
    %v2799 = vadd.f32 %v2798, %v2524
    %v2800 = vadd.f32 %v2799, %v2525
    %v2801 = vadd.f32 %v2800, %v2526
    %v2802 = vadd.f32 %v2801, %v2527
    %v2803 = vadd.f32 %v2802, %v2528
    %v2804 = vadd.f32 %v2803, %v2529
    %v2805 = vadd.f32 %v2804, %v2530
    %v2806 = vadd.f32 %v2805, %v2531
    %v2807 = vadd.f32 %v2806, %v2532
    %v2808 = vadd.f32 %v2807, %v2533
    %v2809 = vadd.f32 %v2808, %v2534
    %v2810 = vadd.f32 %v2809, %v2535
    %v2811 = vadd.f32 %v2810, %v2536
    %v2812 = vadd.f32 %v2811, %v2537
    %v2813 = vadd.f32 %v2812, %v2538
    %v2814 = vadd.f32 %v2813, %v2539
    %v2815 = vadd.f32 %v2814, %v2540
    %v2816 = vadd.f32 %v2815, %v2541
    %v2817 = vadd.f32 %v2816, %v2542
    %v2818 = vrot.slane %v2817, 4
    %v2819 = vadd.f32 %v2817, %v2818
    %v2820 = vrot.slane %v2819, 2
    %v2821 = vadd.f32 %v2819, %v2820
    %v2822 = vrot.slane %v2821, 1
    %v2823 = vadd.f32 %v2821, %v2822
    %v2824 = vadd.f32 %v2543, %v2544
    %v2825 = vadd.f32 %v2824, %v2545
    %v2826 = vadd.f32 %v2825, %v2546
    %v2827 = vadd.f32 %v2826, %v2547
    %v2828 = vadd.f32 %v2827, %v2548
    %v2829 = vadd.f32 %v2828, %v2549
    %v2830 = vadd.f32 %v2829, %v2550
    %v2831 = vadd.f32 %v2830, %v2551
    %v2832 = vadd.f32 %v2831, %v2552
    %v2833 = vadd.f32 %v2832, %v2553
    %v2834 = vadd.f32 %v2833, %v2554
    %v2835 = vadd.f32 %v2834, %v2555
    %v2836 = vadd.f32 %v2835, %v2556
    %v2837 = vadd.f32 %v2836, %v2557
    %v2838 = vadd.f32 %v2837, %v2558
    %v2839 = vadd.f32 %v2838, %v2559
    %v2840 = vadd.f32 %v2839, %v2560
    %v2841 = vadd.f32 %v2840, %v2561
    %v2842 = vadd.f32 %v2841, %v2562
    %v2843 = vadd.f32 %v2842, %v2563
    %v2844 = vadd.f32 %v2843, %v2564
    %v2845 = vadd.f32 %v2844, %v2565
    %v2846 = vadd.f32 %v2845, %v2566
    %v2847 = vadd.f32 %v2846, %v2567
    %v2848 = vadd.f32 %v2847, %v2568
    %v2849 = vadd.f32 %v2848, %v2569
    %v2850 = vadd.f32 %v2849, %v2570
    %v2851 = vadd.f32 %v2850, %v2571
    %v2852 = vadd.f32 %v2851, %v2572
    %v2853 = vadd.f32 %v2852, %v2573
    %v2854 = vadd.f32 %v2853, %v2574
    %v2855 = vrot.slane %v2854, 4
    %v2856 = vadd.f32 %v2854, %v2855
    %v2857 = vrot.slane %v2856, 2
    %v2858 = vadd.f32 %v2856, %v2857
    %v2859 = vrot.slane %v2858, 1
    %v2860 = vadd.f32 %v2858, %v2859
    %v2861 = vadd.f32 %v2575, %v2576
    %v2862 = vadd.f32 %v2861, %v2577
    %v2863 = vadd.f32 %v2862, %v2578
    %v2864 = vadd.f32 %v2863, %v2579
    %v2865 = vadd.f32 %v2864, %v2580
    %v2866 = vadd.f32 %v2865, %v2581
    %v2867 = vadd.f32 %v2866, %v2582
    %v2868 = vadd.f32 %v2867, %v2583
    %v2869 = vadd.f32 %v2868, %v2584
    %v2870 = vadd.f32 %v2869, %v2585
    %v2871 = vadd.f32 %v2870, %v2586
    %v2872 = vadd.f32 %v2871, %v2587
    %v2873 = vadd.f32 %v2872, %v2588
    %v2874 = vadd.f32 %v2873, %v2589
    %v2875 = vadd.f32 %v2874, %v2590
    %v2876 = vadd.f32 %v2875, %v2591
    %v2877 = vadd.f32 %v2876, %v2592
    %v2878 = vadd.f32 %v2877, %v2593
    %v2879 = vadd.f32 %v2878, %v2594
    %v2880 = vadd.f32 %v2879, %v2595
    %v2881 = vadd.f32 %v2880, %v2596
    %v2882 = vadd.f32 %v2881, %v2597
    %v2883 = vadd.f32 %v2882, %v2598
    %v2884 = vadd.f32 %v2883, %v2599
    %v2885 = vadd.f32 %v2884, %v2600
    %v2886 = vadd.f32 %v2885, %v2601
    %v2887 = vadd.f32 %v2886, %v2602
    %v2888 = vadd.f32 %v2887, %v2603
    %v2889 = vadd.f32 %v2888, %v2604
    %v2890 = vadd.f32 %v2889, %v2605
    %v2891 = vadd.f32 %v2890, %v2606
    %v2892 = vrot.slane %v2891, 4
    %v2893 = vadd.f32 %v2891, %v2892
    %v2894 = vrot.slane %v2893, 2
    %v2895 = vadd.f32 %v2893, %v2894
    %v2896 = vrot.slane %v2895, 1
    %v2897 = vadd.f32 %v2895, %v2896
    %v2898 = vadd.f32 %v2607, %v2608
    %v2899 = vadd.f32 %v2898, %v2609
    %v2900 = vadd.f32 %v2899, %v2610
    %v2901 = vadd.f32 %v2900, %v2611
    %v2902 = vadd.f32 %v2901, %v2612
    %v2903 = vadd.f32 %v2902, %v2613
    %v2904 = vadd.f32 %v2903, %v2614
    %v2905 = vadd.f32 %v2904, %v2615
    %v2906 = vadd.f32 %v2905, %v2616
    %v2907 = vadd.f32 %v2906, %v2617
    %v2908 = vadd.f32 %v2907, %v2618
    %v2909 = vadd.f32 %v2908, %v2619
    %v2910 = vadd.f32 %v2909, %v2620
    %v2911 = vadd.f32 %v2910, %v2621
    %v2912 = vadd.f32 %v2911, %v2622
    %v2913 = vadd.f32 %v2912, %v2623
    %v2914 = vadd.f32 %v2913, %v2624
    %v2915 = vadd.f32 %v2914, %v2625
    %v2916 = vadd.f32 %v2915, %v2626
    %v2917 = vadd.f32 %v2916, %v2627
    %v2918 = vadd.f32 %v2917, %v2628
    %v2919 = vadd.f32 %v2918, %v2629
    %v2920 = vadd.f32 %v2919, %v2630
    %v2921 = vadd.f32 %v2920, %v2631
    %v2922 = vadd.f32 %v2921, %v2632
    %v2923 = vadd.f32 %v2922, %v2633
    %v2924 = vadd.f32 %v2923, %v2634
    %v2925 = vadd.f32 %v2924, %v2635
    %v2926 = vadd.f32 %v2925, %v2636
    %v2927 = vadd.f32 %v2926, %v2637
    %v2928 = vadd.f32 %v2927, %v2638
    %v2929 = vrot.slane %v2928, 4
    %v2930 = vadd.f32 %v2928, %v2929
    %v2931 = vrot.slane %v2930, 2
    %v2932 = vadd.f32 %v2930, %v2931
    %v2933 = vrot.slane %v2932, 1
    %v2934 = vadd.f32 %v2932, %v2933
    %v2935 = vrcp.pop 256.0
    %v2936 = vmul.f32 %v2675, %v2935
    %v2937 = vmul.f32 %v2712, %v2935
    %v2938 = vmul.f32 %v2749, %v2935
    %v2939 = vmul.f32 %v2786, %v2935
    %v2940 = vmul.f32 %v2823, %v2935
    %v2941 = vmul.f32 %v2860, %v2935
    %v2942 = vmul.f32 %v2897, %v2935
    %v2943 = vmul.f32 %v2934, %v2935
    %v2944 = vpack.c.bf16 %v2936, %v2936
    %v2945 = vpack.c.bf16 %v2937, %v2937
    %v2946 = vpack.c.bf16 %v2938, %v2938
    %v2947 = vpack.c.bf16 %v2939, %v2939
    %v2948 = vpack.c.bf16 %v2940, %v2940
    %v2949 = vpack.c.bf16 %v2941, %v2941
    %v2950 = vpack.c.bf16 %v2942, %v2942
    %v2951 = vpack.c.bf16 %v2943, %v2943
    %v2952 = vld [vmem:[%s3] sm:$0xf]
    %v2953 = vld [vmem:[%s3 + $0x4] sm:$0xf]
    %v2954 = vld [vmem:[%s3 + $0x8] sm:$0xf]
    %v2955 = vld [vmem:[%s3 + $0xc] sm:$0xf]
    %v2956 = vld [vmem:[%s3 + $0x10] sm:$0xf]
    %v2957 = vld [vmem:[%s3 + $0x14] sm:$0xf]
    %v2958 = vld [vmem:[%s3 + $0x18] sm:$0xf]
    %v2959 = vld [vmem:[%s3 + $0x1c] sm:$0xf]
    %v2960 = vld [vmem:[%s3 + $0x20] sm:$0xf]
    %v2961 = vld [vmem:[%s3 + $0x24] sm:$0xf]
    %v2962 = vld [vmem:[%s3 + $0x28] sm:$0xf]
    %v2963 = vld [vmem:[%s3 + $0x2c] sm:$0xf]
    %v2964 = vld [vmem:[%s3 + $0x30] sm:$0xf]
    %v2965 = vld [vmem:[%s3 + $0x34] sm:$0xf]
    %v2966 = vld [vmem:[%s3 + $0x38] sm:$0xf]
    %v2967 = vld [vmem:[%s3 + $0x3c] sm:$0xf]
    %v2968 = vld [vmem:[%s4] sm:$0x1]
    %v2970 = vlaneseq
    %v2971 = vshrl.u32 %v2970, 7
    %v2972 = vsub.s32 0, %v2971
    %v2973 = vrot.slane %v2968, %v2972
    %v2983 = vunpack.c.l.b16 %v2944
    %v2984 = vunpack.c.l.b16 %v2945
    %v2985 = vunpack.c.l.b16 %v2946
    %v2986 = vunpack.c.l.b16 %v2947
    %v2987 = vunpack.c.l.b16 %v2948
    %v2988 = vunpack.c.l.b16 %v2949
    %v2989 = vunpack.c.l.b16 %v2950
    %v2990 = vunpack.c.l.b16 %v2951
    %vm2991 = vcmask 1041409
    %v2992 = vsel %vm2991, %v2984, %v2983
    %vm2993 = vcmask 1042434
    %v2994 = vsel %vm2993, %v2985, %v2992
    %vm2995 = vcmask 1043459
    %v2996 = vsel %vm2995, %v2986, %v2994
    %vm2997 = vcmask 1044484
    %v2998 = vsel %vm2997, %v2987, %v2996
    %vm2999 = vcmask 1045509
    %v3000 = vsel %vm2999, %v2988, %v2998
    %vm3001 = vcmask 1046534
    %v3002 = vsel %vm3001, %v2989, %v3000
    %vm3003 = vcmask 1047559
    %v3004 = vsel %vm3003, %v2990, %v3002
    %v3005 = vpack.c.b16 %v3004, %v3004
    %v3023 = vunpack.c.l.b16 %v2952
    %v3024 = vunpack.c.l.b16 %v2953
    %v3025 = vunpack.c.l.b16 %v2954
    %v3026 = vunpack.c.l.b16 %v2955
    %v3027 = vunpack.c.l.b16 %v2956
    %v3028 = vunpack.c.l.b16 %v2957
    %v3029 = vunpack.c.l.b16 %v2958
    %v3030 = vunpack.c.l.b16 %v2959
    %v3031 = vunpack.c.l.b16 %v2960
    %v3032 = vunpack.c.l.b16 %v2961
    %v3033 = vunpack.c.l.b16 %v2962
    %v3034 = vunpack.c.l.b16 %v2963
    %v3035 = vunpack.c.l.b16 %v2964
    %v3036 = vunpack.c.l.b16 %v2965
    %v3037 = vunpack.c.l.b16 %v2966
    %v3038 = vunpack.c.l.b16 %v2967
    %v3039 = vpack.c.b16 %v3024, %v3023
    %v3040 = vpack.c.b16 %v3026, %v3025
    %v3041 = vpack.c.b16 %v3028, %v3027
    %v3042 = vpack.c.b16 %v3030, %v3029
    %v3043 = vpack.c.b16 %v3032, %v3031
    %v3044 = vpack.c.b16 %v3034, %v3033
    %v3045 = vpack.c.b16 %v3036, %v3035
    %v3046 = vpack.c.b16 %v3038, %v3037
    %3055 = vmatprep.subr.bf16.mxu0 0
    %3056 = vmatpush1.bf16.msra.mxu0 %v3039
    %3057 = vmatprep.subr.bf16.mxu0 0
    %3058 = vmatpush1.bf16.msra.mxu0 %v3040
    %3059 = vmatprep.subr.bf16.mxu0 0
    %3060 = vmatpush1.bf16.msra.mxu0 %v3041
    %3061 = vmatprep.subr.bf16.mxu0 0
    %3062 = vmatpush1.bf16.msra.mxu0 %v3042
    %3063 = vmatprep.subr.bf16.mxu0 0
    %3064 = vmatpush1.bf16.msra.mxu0 %v3043
    %3065 = vmatprep.subr.bf16.mxu0 0
    %3066 = vmatpush1.bf16.msra.mxu0 %v3044
    %3067 = vmatprep.subr.bf16.mxu0 0
    %3068 = vmatpush1.bf16.msra.mxu0 %v3045
    %3069 = vmatprep.subr.bf16.mxu0 0
    %3070 = vmatpush1.bf16.msra.mxu0 %v3046
    %3071 = vmatprep.subr.bf16.mxu0 0
    %3072 = vmatpush1.bf16.msra.mxu0 0
    %3073 = vmatprep.subr.bf16.mxu0 0
    %3074 = vmatpush1.bf16.msra.mxu0 0
    %3075 = vmatprep.subr.bf16.mxu0 0
    %3076 = vmatpush1.bf16.msra.mxu0 0
    %3077 = vmatprep.subr.bf16.mxu0 0
    %3078 = vmatpush1.bf16.msra.mxu0 0
    %3079 = vmatprep.subr.bf16.mxu0 0
    %3080 = vmatpush1.bf16.msra.mxu0 0
    %3081 = vmatprep.subr.bf16.mxu0 0
    %3082 = vmatpush1.bf16.msra.mxu0 0
    %3083 = vmatprep.subr.bf16.mxu0 0
    %3084 = vmatpush1.bf16.msra.mxu0 0
    %3085 = vmatprep.subr.bf16.mxu0 0
    %3086 = vmatpush1.bf16.msra.mxu0 0
    %3087 = vmatprep.mubr.bf16.mxu0 0
    %3088 = vmatmul.mubr.bf16.gmra.mrb[0].mxu0 %v3005
    %v3089 = vpop.f32.mrb[0].mxu0
    %v3090 = vadd.f32 %v2973, %v3089
    %v3091 = vpop.f32.mrb[0].mxu0
    %v3092 = vpop.f32.mrb[0].mxu0
    %v3093 = vpop.f32.mrb[0].mxu0
    %3094 = vdwg.mxu0
    %v3095 = vmax.f32 %v3090, 0.0
    %3096 = vst [vmem:[#allocation2] sm:$0xff] %v3095
    // Predicated region
    $region22: #{tpu_custom_call.1} parent=1 // pred_check
      _
    $region23: #{tpu_custom_call.1} parent=1 // pred_check_branch
      %3098 = sbr.rel (0) target = $region25
    $region24: #{tpu_custom_call.1} parent=1 // pred_region
      %s3100 = ssub.s32 128, 128
      %3101 = vsyncadd [#allocation3], %s3100
      %s3103 = sshll.u32 [#allocation2], 4
      %s3104 = int_to_ptr.vmem [resolvable:$true] %s3103
      %3106 = dma.vmem_to_hbm [thread:$0]  %s3104, 128, %s5, [#allocation3]
    $region25: #{tpu_custom_call.1} parent=1 // pred_fallthru
      _
    // Predicated region
    $region26: #{tpu_custom_call.1} parent=1 // pred_check
      _
    $region27: #{tpu_custom_call.1} parent=1 // pred_check_branch
      %3108 = sbr.rel (0) target = $region29
    $region28: #{tpu_custom_call.1} parent=1 // pred_region
      %3109 = dma.done [#allocation3], 128
    $region29: #{tpu_custom_call.1} parent=1 // pred_fallthru
      _
    %3110 = vsyncpa [#allocation3], 1

</llo_original>
